<compile_context>
chip_gen: v6e
topology: v6e:2x2x1
jax: 0.10.0
libtpu: 0.0.40
codegen_flags: <defaults>
</compile_context>

<pallas_src>
import jax
import jax.numpy as jnp
from jax.experimental import pallas as pl
from jax.experimental.pallas import tpu as pltpu

INPUT_SIZE = 3 * 543   # 1629
HIDDEN = 256
ENCODING_DIM = 128


def _encoder_kernel(x_ref, w1_ref, b1_ref, w2_ref, b2_ref, o_ref):
    compute_dtype = w1_ref.dtype           # bf16 in the default configuration
    # Layer 1: x @ W1 + b1, ReLU.  bf16 MXU inputs, f32 accumulate.
    x = x_ref[...].astype(compute_dtype)
    h = jnp.dot(x, w1_ref[...], preferred_element_type=jnp.float32)
    h = jnp.maximum(h + b1_ref[...], 0.0)   # b1 is (1, HIDDEN) f32, broadcasts
    # Layer 2: h @ W2 + b2, ReLU.
    h = h.astype(compute_dtype)
    o = jnp.dot(h, w2_ref[...], preferred_element_type=jnp.float32)
    o_ref[...] = jnp.maximum(o + b2_ref[...], 0.0).astype(o_ref.dtype)


def encoder_forward(x, w1, b1, w2, b2, *, batch_tile=512,
                    compute_dtype=jnp.bfloat16):
    """Fused 2-layer MLP encoder. x: [B, 1629] -> [B, 128] f32."""
    B, in_size = x.shape
    assert in_size == w1.shape[0]
    hidden = w1.shape[1]
    out_size = w2.shape[1]

    # Matmul operands in bf16 (no-op when weights are already stored bf16);
    # biases kept f32 (added after the f32 accumulate).
    w1 = w1.astype(compute_dtype)
    w2 = w2.astype(compute_dtype)
    b1_2d = b1.reshape(1, hidden).astype(jnp.float32)
    b2_2d = b2.reshape(1, out_size).astype(jnp.float32)

    # Batch tile: multiple of 8 sublanes, capped at `batch_tile`; the last grid
    # block may be partial (masked store, each out row depends only on its own
    # x row, so garbage rows in the partial block never leak into real output).
    TB = min(batch_tile, max(8, -(-B // 8) * 8))
    num_steps = pl.cdiv(B, TB)

    # Advisory cost hint so XLA can schedule neighbouring ops around this
    # small, DMA-bound kernel.
    flops = 2 * B * (in_size * hidden + hidden * out_size)
    bytes_accessed = (
        x.size * x.dtype.itemsize
        + w1.size * w1.dtype.itemsize + w2.size * w2.dtype.itemsize
        + b1_2d.size * 4 + b2_2d.size * 4
        + B * out_size * 4
    )
    cost = pl.CostEstimate(flops=flops, transcendentals=0,
                           bytes_accessed=bytes_accessed)

    # Megacore only pays off when there are enough independent batch tiles to
    # amortize duplicating the resident-weight DMA on each TensorCore.
    dim_sem = ("parallel",) if num_steps >= 8 else ("arbitrary",)

    # TODO(synk): P10 cross-call weight prefetch (separate pallas_call that
    # starts the W1/W2 DMA and returns a semaphore + VMEM ref) for the
    # repeated-call serving regime where the per-call weight fetch dominates.
    out = pl.pallas_call(
        _encoder_kernel,
        out_shape=jax.ShapeDtypeStruct((B, out_size), jnp.float32),
        grid_spec=pltpu.PrefetchScalarGridSpec(
            num_scalar_prefetch=0,
            grid=(num_steps,),
            in_specs=[
                # Streamed per grid step (double-buffered by the pipeline):
                pl.BlockSpec((TB, in_size), lambda i: (i, 0)),
                # Constant index_map -> VMEM-resident across the whole grid:
                pl.BlockSpec((in_size, hidden), lambda i: (0, 0)),
                pl.BlockSpec((1, hidden), lambda i: (0, 0)),
                pl.BlockSpec((hidden, out_size), lambda i: (0, 0)),
                pl.BlockSpec((1, out_size), lambda i: (0, 0)),
            ],
            out_specs=pl.BlockSpec((TB, out_size), lambda i: (i, 0)),
        ),
        compiler_params=pltpu.CompilerParams(dimension_semantics=dim_sem),
        cost_estimate=cost,
    )(x, w1, b1_2d, w2, b2_2d)

    return out


def init_params(key, dtype=jnp.bfloat16):
    """Deterministic init mimicking nn.Linear's U(-1/sqrt(fan_in), 1/sqrt(fan_in)).

    Weights are stored in `dtype` (bf16 by default, per perf review) so the
    kernel's dominant resident-weight DMA is half-width.
    """
    k1, k2, k3, k4 = jax.random.split(key, 4)
    bound1 = 1.0 / (INPUT_SIZE ** 0.5)
    bound2 = 1.0 / (HIDDEN ** 0.5)
    w1 = jax.random.uniform(k1, (INPUT_SIZE, HIDDEN), jnp.float32,
                            -bound1, bound1).astype(dtype)
    b1 = jax.random.uniform(k2, (HIDDEN,), jnp.float32, -bound1, bound1)
    w2 = jax.random.uniform(k3, (HIDDEN, ENCODING_DIM), jnp.float32,
                            -bound2, bound2).astype(dtype)
    b2 = jax.random.uniform(k4, (ENCODING_DIM,), jnp.float32, -bound2, bound2)
    return w1, b1, w2, b2


if __name__ == "__main__":
    key = jax.random.PRNGKey(0)
    k_x, k_p = jax.random.split(key)

    B = 8
    x = jax.random.normal(k_x, (B, INPUT_SIZE), dtype=jnp.float32)
    w1, b1, w2, b2 = init_params(k_p)

    out = encoder_forward(x, w1, b1, w2, b2)
    out = jax.block_until_ready(out)

    # Reference in plain JAX (same math as the PyTorch module), computed in f32
    # from the same (bf16-stored) weight values.  The kernel runs its matmuls
    # on bf16 operands with f32 accumulation, so allow a loosened tolerance.
    w1f = w1.astype(jnp.float32)
    w2f = w2.astype(jnp.float32)
    ref = jnp.maximum(jnp.maximum(x @ w1f + b1, 0.0) @ w2f + b2, 0.0)

    assert out.shape == (B, ENCODING_DIM)
    assert jnp.allclose(out, ref, atol=2e-2, rtol=2e-2)

    print("KERNEL_OK")
</pallas_src>

<mosaic_0001>
module attributes {stable_mosaic.version = 11 : i64} {
  func.func @_encoder_kernel(%arg0: i32, %arg1: memref<8x1629xf32, #tpu.memory_space<vmem>>, %arg2: memref<1629x256xbf16, #tpu.memory_space<vmem>>, %arg3: memref<1x256xf32, #tpu.memory_space<vmem>>, %arg4: memref<256x128xbf16, #tpu.memory_space<vmem>>, %arg5: memref<1x128xf32, #tpu.memory_space<vmem>>, %arg6: memref<8x128xf32, #tpu.memory_space<vmem>>) attributes {dimension_semantics = [#tpu.dimension_semantics<arbitrary>], iteration_bounds = array<i64: 1>, scalar_prefetch = 0 : i64, scratch_operands = 0 : i64, tpu.core_type = #tpu.core_type<tc>, window_params = [{transform_indices = @transform_0, window_bounds = array<i64: 8, 1629>}, {pipeline_mode = #tpu.pipeline_mode<synchronous>, transform_indices = @transform_1, window_bounds = array<i64: 1629, 256>}, {pipeline_mode = #tpu.pipeline_mode<synchronous>, transform_indices = @transform_2, window_bounds = array<i64: 1, 256>}, {pipeline_mode = #tpu.pipeline_mode<synchronous>, transform_indices = @transform_3, window_bounds = array<i64: 256, 128>}, {pipeline_mode = #tpu.pipeline_mode<synchronous>, transform_indices = @transform_4, window_bounds = array<i64: 1, 128>}, {transform_indices = @transform_5, window_bounds = array<i64: 8, 128>}]} {
    %c0 = arith.constant 0 : index
    %c0_0 = arith.constant 0 : index
    %0 = vector.load %arg1[%c0, %c0_0] : memref<8x1629xf32, #tpu.memory_space<vmem>>, vector<8x1629xf32>
    %1 = arith.truncf %0 : vector<8x1629xf32> to vector<8x1629xbf16>
    %c0_1 = arith.constant 0 : index
    %c0_2 = arith.constant 0 : index
    %2 = vector.load %arg2[%c0_1, %c0_2] : memref<1629x256xbf16, #tpu.memory_space<vmem>>, vector<1629x256xbf16>
    %cst = arith.constant dense<0.000000e+00> : vector<8x256xf32>
    %3 = tpu.matmul %1, %2, %cst {dimension_numbers = #tpu.dot_dimension_numbers<[1], [0], [0], [1], [0, 0, 1, 1], [], []>} : vector<8x1629xbf16>, vector<1629x256xbf16>, vector<8x256xf32> -> vector<8x256xf32>
    %c0_3 = arith.constant 0 : index
    %c0_4 = arith.constant 0 : index
    %4 = vector.load %arg3[%c0_3, %c0_4] : memref<1x256xf32, #tpu.memory_space<vmem>>, vector<1x256xf32>
    %5 = vector.broadcast %4 : vector<1x256xf32> to vector<8x256xf32>
    %6 = arith.addf %3, %5 : vector<8x256xf32>
    %cst_5 = arith.constant 0.000000e+00 : f32
    %7 = vector.broadcast %cst_5 : f32 to vector<8x256xf32>
    %8 = arith.maximumf %6, %7 : vector<8x256xf32>
    %9 = arith.truncf %8 : vector<8x256xf32> to vector<8x256xbf16>
    %c0_6 = arith.constant 0 : index
    %c0_7 = arith.constant 0 : index
    %10 = vector.load %arg4[%c0_6, %c0_7] : memref<256x128xbf16, #tpu.memory_space<vmem>>, vector<256x128xbf16>
    %cst_8 = arith.constant dense<0.000000e+00> : vector<8x128xf32>
    %11 = tpu.matmul %9, %10, %cst_8 {dimension_numbers = #tpu.dot_dimension_numbers<[1], [0], [0], [1], [0, 0, 1, 1], [], []>} : vector<8x256xbf16>, vector<256x128xbf16>, vector<8x128xf32> -> vector<8x128xf32>
    %c0_9 = arith.constant 0 : index
    %c0_10 = arith.constant 0 : index
    %12 = vector.load %arg5[%c0_9, %c0_10] : memref<1x128xf32, #tpu.memory_space<vmem>>, vector<1x128xf32>
    %13 = vector.broadcast %12 : vector<1x128xf32> to vector<8x128xf32>
    %14 = arith.addf %11, %13 : vector<8x128xf32>
    %cst_11 = arith.constant 0.000000e+00 : f32
    %15 = vector.broadcast %cst_11 : f32 to vector<8x128xf32>
    %16 = arith.maximumf %14, %15 : vector<8x128xf32>
    %c0_12 = arith.constant 0 : index
    %c0_13 = arith.constant 0 : index
    %17 = vector.load %arg6[%c0_12, %c0_13] : memref<8x128xf32, #tpu.memory_space<vmem>>, vector<8x128xf32>
    tpu.vector_store %arg6[%c0_12, %c0_13], %16 {strides = array<i32>} : memref<8x128xf32, #tpu.memory_space<vmem>>, vector<8x128xf32>,
    return
  }
  func.func @transform_0(%arg0: i32) -> (i32, i32) {
    %c0_i32 = arith.constant 0 : i32
    %c0_i32_0 = arith.constant 0 : i32
    return %arg0, %c0_i32 : i32, i32
  }
  func.func @transform_1(%arg0: i32) -> (i32, i32) {
    %c0_i32 = arith.constant 0 : i32
    %c0_i32_0 = arith.constant 0 : i32
    %c0_i32_1 = arith.constant 0 : i32
    return %c0_i32, %c0_i32_0 : i32, i32
  }
  func.func @transform_2(%arg0: i32) -> (i32, i32) {
    %c0_i32 = arith.constant 0 : i32
    %c0_i32_0 = arith.constant 0 : i32
    %c0_i32_1 = arith.constant 0 : i32
    return %c0_i32, %c0_i32_0 : i32, i32
  }
  func.func @transform_3(%arg0: i32) -> (i32, i32) {
    %c0_i32 = arith.constant 0 : i32
    %c0_i32_0 = arith.constant 0 : i32
    %c0_i32_1 = arith.constant 0 : i32
    return %c0_i32, %c0_i32_0 : i32, i32
  }
  func.func @transform_4(%arg0: i32) -> (i32, i32) {
    %c0_i32 = arith.constant 0 : i32
    %c0_i32_0 = arith.constant 0 : i32
    %c0_i32_1 = arith.constant 0 : i32
    return %c0_i32, %c0_i32_0 : i32, i32
  }
  func.func @transform_5(%arg0: i32) -> (i32, i32) {
    %c0_i32 = arith.constant 0 : i32
    %c0_i32_0 = arith.constant 0 : i32
    return %arg0, %c0_i32 : i32, i32
  }
}

</mosaic_0001>

<llo_original>
// kernel: tpu_custom_call.1
$region0: #{tpu_custom_call.1}
  #allocation0 [shape = 'u32[]', space=smem, size = 0x4, offset = 0x4, fixed_abs, tag = 'smem constant byte address 0x4 - core index']
  #allocation1 [shape = 'u32[144,128]{1,0:T(1,128)}', space=vmem, size = 0x12000, scoped, tag = 'internal scratch']
  %s0 = inlined_call_operand.hbm [shape: f32[8,1629], index: 0, kind: input, shape index: {}]
  %s1 = inlined_call_operand.hbm [shape: bf16[1629,256], index: 1, kind: input, shape index: {}]
  %s2 = inlined_call_operand.vmem [shape: f32[1,256], index: 2, kind: input, shape index: {}]
  %s3 = inlined_call_operand.hbm [shape: bf16[256,128], index: 3, kind: input, shape index: {}]
  %s4 = inlined_call_operand.vmem [shape: f32[1,128], index: 4, kind: input, shape index: {}]
  %s5 = inlined_call_operand.hbm [shape: f32[8,128], index: 5, kind: output, shape index: {}]
  %s6 = sld [smem:[#allocation0]]
  $region42: #{tpu_custom_call.1} parent=0
    _
  %s8 = ssub.s32 1, %s6
  %s9 = scalar_select 0, %s8, %s6
  $region1: #{tpu_custom_call.1} parent=0
    #allocation2 [shape = 'u8[53248]{0}', space=vmem, size = 0xd000, scoped, tag = 'input window, operand 0, single buffered']
    #allocation3 [shape = 's32[1]{0}', space=sflag, size = 0x4, scoped, tag = 'scoped memory for tpu_custom_call.1']
    #allocation4 [shape = 's32[1]{0}', space=sflag, size = 0x4, scoped, tag = 'scoped memory for tpu_custom_call.1']
    #allocation5 [shape = 'u8[835584]{0}', space=vmem, size = 0xcc000, scoped, tag = 'input window, operand 1, single buffered']
    #allocation6 [shape = 's32[1]{0}', space=sflag, size = 0x4, scoped, tag = 'scoped memory for tpu_custom_call.1']
    #allocation7 [shape = 'u8[65536]{0}', space=vmem, size = 0x10000, scoped, tag = 'input window, operand 3, single buffered']
    #allocation8 [shape = 'u8[4096]{0}', space=vmem, size = 0x1000, scoped, tag = 'output window, operand 0, single buffered']
    %10 = vsyncpa [#allocation3], 0
    %11 = vsyncpa [#allocation6], 0
    %12 = vsyncpa [#allocation4], 0
    // Predicated region
    $region2: #{tpu_custom_call.1} parent=1 // pred_check
      _
    $region3: #{tpu_custom_call.1} parent=1 // pred_check_branch
      %14 = sbr.rel (0) target = $region5
    $region4: #{tpu_custom_call.1} parent=1 // pred_region
      %s16 = ssub.s32 1664, 1664
      %17 = vsyncadd [#allocation3], %s16
      %s19 = sshll.u32 [#allocation2], 4
      %s20 = int_to_ptr.vmem [resolvable:$true] %s19
      %22 = dma.hbm_to_vmem [thread:$0]  %s0, 1664, %s20, [#allocation3]
    $region5: #{tpu_custom_call.1} parent=1 // pred_fallthru
      _
    // Predicated region
    $region6: #{tpu_custom_call.1} parent=1 // pred_check
      _
    $region7: #{tpu_custom_call.1} parent=1 // pred_check_branch
      %24 = sbr.rel (0) target = $region9
    $region8: #{tpu_custom_call.1} parent=1 // pred_region
      %s26 = ssub.s32 26112, 26112
      %27 = vsyncadd [#allocation6], %s26
      %s28 = sshll.u32 [#allocation5], 4
      %s29 = int_to_ptr.vmem [resolvable:$true] %s28
      %34 = dma.hbm_to_vmem [thread:$0]  %s1, 26112, %s29, [#allocation6], 128, 128, 8
    $region9: #{tpu_custom_call.1} parent=1 // pred_fallthru
      _
    // Predicated region
    $region10: #{tpu_custom_call.1} parent=1 // pred_check
      _
    $region11: #{tpu_custom_call.1} parent=1 // pred_check_branch
      %36 = sbr.rel (0) target = $region13
    $region12: #{tpu_custom_call.1} parent=1 // pred_region
      _
    $region13: #{tpu_custom_call.1} parent=1 // pred_fallthru
      _
    // Predicated region
    $region14: #{tpu_custom_call.1} parent=1 // pred_check
      _
    $region15: #{tpu_custom_call.1} parent=1 // pred_check_branch
      %38 = sbr.rel (0) target = $region17
    $region16: #{tpu_custom_call.1} parent=1 // pred_region
      %s40 = ssub.s32 2048, 2048
      %41 = vsyncadd [#allocation6], %s40
      %s42 = sshll.u32 [#allocation7], 4
      %s43 = int_to_ptr.vmem [resolvable:$true] %s42
      %48 = dma.hbm_to_vmem [thread:$0]  %s3, 2048, %s43, [#allocation6], 64, 64, 4
    $region17: #{tpu_custom_call.1} parent=1 // pred_fallthru
      _
    // Predicated region
    $region18: #{tpu_custom_call.1} parent=1 // pred_check
      _
    $region19: #{tpu_custom_call.1} parent=1 // pred_check_branch
      %50 = sbr.rel (0) target = $region21
    $region20: #{tpu_custom_call.1} parent=1 // pred_region
      _
    $region21: #{tpu_custom_call.1} parent=1 // pred_fallthru
      _
    // Predicated region
    $region22: #{tpu_custom_call.1} parent=1 // pred_check
      _
    $region23: #{tpu_custom_call.1} parent=1 // pred_check_branch
      %52 = sbr.rel (0) target = $region25
    $region24: #{tpu_custom_call.1} parent=1 // pred_region
      %53 = dma.done [#allocation3], 1664
    $region25: #{tpu_custom_call.1} parent=1 // pred_fallthru
      _
    // Predicated region
    $region26: #{tpu_custom_call.1} parent=1 // pred_check
      _
    $region27: #{tpu_custom_call.1} parent=1 // pred_check_branch
      %55 = sbr.rel (0) target = $region29
    $region28: #{tpu_custom_call.1} parent=1 // pred_region
      %56 = dma.done [#allocation6], 26112
    $region29: #{tpu_custom_call.1} parent=1 // pred_fallthru
      _
    // Predicated region
    $region30: #{tpu_custom_call.1} parent=1 // pred_check
      _
    $region31: #{tpu_custom_call.1} parent=1 // pred_check_branch
      %58 = sbr.rel (0) target = $region33
    $region32: #{tpu_custom_call.1} parent=1 // pred_region
      %59 = dma.done [#allocation6], 2048
    $region33: #{tpu_custom_call.1} parent=1 // pred_fallthru
      _
    %v61 = vld [vmem:[#allocation2] sm:$0xff]
    %v62 = vld [vmem:[#allocation2 + $0x8] sm:$0xff]
    %v63 = vld [vmem:[#allocation2 + $0x10] sm:$0xff]
    %v64 = vld [vmem:[#allocation2 + $0x18] sm:$0xff]
    %v65 = vld [vmem:[#allocation2 + $0x20] sm:$0xff]
    %v66 = vld [vmem:[#allocation2 + $0x28] sm:$0xff]
    %v67 = vld [vmem:[#allocation2 + $0x30] sm:$0xff]
    %v68 = vld [vmem:[#allocation2 + $0x38] sm:$0xff]
    %v69 = vld [vmem:[#allocation2 + $0x40] sm:$0xff]
    %v70 = vld [vmem:[#allocation2 + $0x48] sm:$0xff]
    %v71 = vld [vmem:[#allocation2 + $0x50] sm:$0xff]
    %v72 = vld [vmem:[#allocation2 + $0x58] sm:$0xff]
    %v73 = vld [vmem:[#allocation2 + $0x60] sm:$0xff]
    %v74 = vpack.c.bf16 %v61, %v61
    %v75 = vpack.c.bf16 %v62, %v62
    %v76 = vpack.c.bf16 %v63, %v63
    %v77 = vpack.c.bf16 %v64, %v64
    %v78 = vpack.c.bf16 %v65, %v65
    %v79 = vpack.c.bf16 %v66, %v66
    %v80 = vpack.c.bf16 %v67, %v67
    %v81 = vpack.c.bf16 %v68, %v68
    %v82 = vpack.c.bf16 %v69, %v69
    %v83 = vpack.c.bf16 %v70, %v70
    %v84 = vpack.c.bf16 %v71, %v71
    %v85 = vpack.c.bf16 %v72, %v72
    %v86 = vpack.c.bf16 %v73, %v73
    %v87 = vld [vmem:[#allocation5] sm:$0xff]
    %v88 = vld [vmem:[#allocation5 + $0x8] sm:$0xff]
    %v89 = vld [vmem:[#allocation5 + $0x10] sm:$0xff]
    %v90 = vld [vmem:[#allocation5 + $0x18] sm:$0xff]
    %v91 = vld [vmem:[#allocation5 + $0x20] sm:$0xff]
    %v92 = vld [vmem:[#allocation5 + $0x28] sm:$0xff]
    %v93 = vld [vmem:[#allocation5 + $0x30] sm:$0xff]
    %v94 = vld [vmem:[#allocation5 + $0x38] sm:$0xff]
    %v95 = vld [vmem:[#allocation5 + $0x40] sm:$0xff]
    %v96 = vld [vmem:[#allocation5 + $0x48] sm:$0xff]
    %v97 = vld [vmem:[#allocation5 + $0x50] sm:$0xff]
    %v98 = vld [vmem:[#allocation5 + $0x58] sm:$0xff]
    %v99 = vld [vmem:[#allocation5 + $0x60] sm:$0xff]
    %v100 = vld [vmem:[#allocation5 + $0x68] sm:$0xff]
    %v101 = vld [vmem:[#allocation5 + $0x70] sm:$0xff]
    %v102 = vld [vmem:[#allocation5 + $0x78] sm:$0xff]
    %v103 = vld [vmem:[#allocation5 + $0x80] sm:$0xff]
    %v104 = vld [vmem:[#allocation5 + $0x88] sm:$0xff]
    %v105 = vld [vmem:[#allocation5 + $0x90] sm:$0xff]
    %v106 = vld [vmem:[#allocation5 + $0x98] sm:$0xff]
    %v107 = vld [vmem:[#allocation5 + $0xa0] sm:$0xff]
    %v108 = vld [vmem:[#allocation5 + $0xa8] sm:$0xff]
    %v109 = vld [vmem:[#allocation5 + $0xb0] sm:$0xff]
    %v110 = vld [vmem:[#allocation5 + $0xb8] sm:$0xff]
    %v111 = vld [vmem:[#allocation5 + $0xc0] sm:$0xff]
    %v112 = vld [vmem:[#allocation5 + $0xc8] sm:$0xff]
    %v113 = vld [vmem:[#allocation5 + $0xd0] sm:$0xff]
    %v114 = vld [vmem:[#allocation5 + $0xd8] sm:$0xff]
    %v115 = vld [vmem:[#allocation5 + $0xe0] sm:$0xff]
    %v116 = vld [vmem:[#allocation5 + $0xe8] sm:$0xff]
    %v117 = vld [vmem:[#allocation5 + $0xf0] sm:$0xff]
    %v118 = vld [vmem:[#allocation5 + $0xf8] sm:$0xff]
    %v119 = vld [vmem:[#allocation5 + $0x100] sm:$0xff]
    %v120 = vld [vmem:[#allocation5 + $0x108] sm:$0xff]
    %v121 = vld [vmem:[#allocation5 + $0x110] sm:$0xff]
    %v122 = vld [vmem:[#allocation5 + $0x118] sm:$0xff]
    %v123 = vld [vmem:[#allocation5 + $0x120] sm:$0xff]
    %v124 = vld [vmem:[#allocation5 + $0x128] sm:$0xff]
    %v125 = vld [vmem:[#allocation5 + $0x130] sm:$0xff]
    %v126 = vld [vmem:[#allocation5 + $0x138] sm:$0xff]
    %v127 = vld [vmem:[#allocation5 + $0x140] sm:$0xff]
    %v128 = vld [vmem:[#allocation5 + $0x148] sm:$0xff]
    %v129 = vld [vmem:[#allocation5 + $0x150] sm:$0xff]
    %v130 = vld [vmem:[#allocation5 + $0x158] sm:$0xff]
    %v131 = vld [vmem:[#allocation5 + $0x160] sm:$0xff]
    %v132 = vld [vmem:[#allocation5 + $0x168] sm:$0xff]
    %v133 = vld [vmem:[#allocation5 + $0x170] sm:$0xff]
    %v134 = vld [vmem:[#allocation5 + $0x178] sm:$0xff]
    %v135 = vld [vmem:[#allocation5 + $0x180] sm:$0xff]
    %v136 = vld [vmem:[#allocation5 + $0x188] sm:$0xff]
    %v137 = vld [vmem:[#allocation5 + $0x190] sm:$0xff]
    %v138 = vld [vmem:[#allocation5 + $0x198] sm:$0xff]
    %v139 = vld [vmem:[#allocation5 + $0x1a0] sm:$0xff]
    %v140 = vld [vmem:[#allocation5 + $0x1a8] sm:$0xff]
    %v141 = vld [vmem:[#allocation5 + $0x1b0] sm:$0xff]
    %v142 = vld [vmem:[#allocation5 + $0x1b8] sm:$0xff]
    %v143 = vld [vmem:[#allocation5 + $0x1c0] sm:$0xff]
    %v144 = vld [vmem:[#allocation5 + $0x1c8] sm:$0xff]
    %v145 = vld [vmem:[#allocation5 + $0x1d0] sm:$0xff]
    %v146 = vld [vmem:[#allocation5 + $0x1d8] sm:$0xff]
    %v147 = vld [vmem:[#allocation5 + $0x1e0] sm:$0xff]
    %v148 = vld [vmem:[#allocation5 + $0x1e8] sm:$0xff]
    %v149 = vld [vmem:[#allocation5 + $0x1f0] sm:$0xff]
    %v150 = vld [vmem:[#allocation5 + $0x1f8] sm:$0xff]
    %v151 = vld [vmem:[#allocation5 + $0x200] sm:$0xff]
    %v152 = vld [vmem:[#allocation5 + $0x208] sm:$0xff]
    %v153 = vld [vmem:[#allocation5 + $0x210] sm:$0xff]
    %v154 = vld [vmem:[#allocation5 + $0x218] sm:$0xff]
    %v155 = vld [vmem:[#allocation5 + $0x220] sm:$0xff]
    %v156 = vld [vmem:[#allocation5 + $0x228] sm:$0xff]
    %v157 = vld [vmem:[#allocation5 + $0x230] sm:$0xff]
    %v158 = vld [vmem:[#allocation5 + $0x238] sm:$0xff]
    %v159 = vld [vmem:[#allocation5 + $0x240] sm:$0xff]
    %v160 = vld [vmem:[#allocation5 + $0x248] sm:$0xff]
    %v161 = vld [vmem:[#allocation5 + $0x250] sm:$0xff]
    %v162 = vld [vmem:[#allocation5 + $0x258] sm:$0xff]
    %v163 = vld [vmem:[#allocation5 + $0x260] sm:$0xff]
    %v164 = vld [vmem:[#allocation5 + $0x268] sm:$0xff]
    %v165 = vld [vmem:[#allocation5 + $0x270] sm:$0xff]
    %v166 = vld [vmem:[#allocation5 + $0x278] sm:$0xff]
    %v167 = vld [vmem:[#allocation5 + $0x280] sm:$0xff]
    %v168 = vld [vmem:[#allocation5 + $0x288] sm:$0xff]
    %v169 = vld [vmem:[#allocation5 + $0x290] sm:$0xff]
    %v170 = vld [vmem:[#allocation5 + $0x298] sm:$0xff]
    %v171 = vld [vmem:[#allocation5 + $0x2a0] sm:$0xff]
    %v172 = vld [vmem:[#allocation5 + $0x2a8] sm:$0xff]
    %v173 = vld [vmem:[#allocation5 + $0x2b0] sm:$0xff]
    %v174 = vld [vmem:[#allocation5 + $0x2b8] sm:$0xff]
    %v175 = vld [vmem:[#allocation5 + $0x2c0] sm:$0xff]
    %v176 = vld [vmem:[#allocation5 + $0x2c8] sm:$0xff]
    %v177 = vld [vmem:[#allocation5 + $0x2d0] sm:$0xff]
    %v178 = vld [vmem:[#allocation5 + $0x2d8] sm:$0xff]
    %v179 = vld [vmem:[#allocation5 + $0x2e0] sm:$0xff]
    %v180 = vld [vmem:[#allocation5 + $0x2e8] sm:$0xff]
    %v181 = vld [vmem:[#allocation5 + $0x2f0] sm:$0xff]
    %v182 = vld [vmem:[#allocation5 + $0x2f8] sm:$0xff]
    %v183 = vld [vmem:[#allocation5 + $0x300] sm:$0xff]
    %v184 = vld [vmem:[#allocation5 + $0x308] sm:$0xff]
    %v185 = vld [vmem:[#allocation5 + $0x310] sm:$0xff]
    %v186 = vld [vmem:[#allocation5 + $0x318] sm:$0xff]
    %v187 = vld [vmem:[#allocation5 + $0x320] sm:$0xff]
    %v188 = vld [vmem:[#allocation5 + $0x328] sm:$0xff]
    %v189 = vld [vmem:[#allocation5 + $0x330] sm:$0xff]
    %v190 = vld [vmem:[#allocation5 + $0x338] sm:$0xff]
    %v191 = vld [vmem:[#allocation5 + $0x340] sm:$0xff]
    %v192 = vld [vmem:[#allocation5 + $0x348] sm:$0xff]
    %v193 = vld [vmem:[#allocation5 + $0x350] sm:$0xff]
    %v194 = vld [vmem:[#allocation5 + $0x358] sm:$0xff]
    %v195 = vld [vmem:[#allocation5 + $0x360] sm:$0xff]
    %v196 = vld [vmem:[#allocation5 + $0x368] sm:$0xff]
    %v197 = vld [vmem:[#allocation5 + $0x370] sm:$0xff]
    %v198 = vld [vmem:[#allocation5 + $0x378] sm:$0xff]
    %v199 = vld [vmem:[#allocation5 + $0x380] sm:$0xff]
    %v200 = vld [vmem:[#allocation5 + $0x388] sm:$0xff]
    %v201 = vld [vmem:[#allocation5 + $0x390] sm:$0xff]
    %v202 = vld [vmem:[#allocation5 + $0x398] sm:$0xff]
    %v203 = vld [vmem:[#allocation5 + $0x3a0] sm:$0xff]
    %v204 = vld [vmem:[#allocation5 + $0x3a8] sm:$0xff]
    %v205 = vld [vmem:[#allocation5 + $0x3b0] sm:$0xff]
    %v206 = vld [vmem:[#allocation5 + $0x3b8] sm:$0xff]
    %v207 = vld [vmem:[#allocation5 + $0x3c0] sm:$0xff]
    %v208 = vld [vmem:[#allocation5 + $0x3c8] sm:$0xff]
    %v209 = vld [vmem:[#allocation5 + $0x3d0] sm:$0xff]
    %v210 = vld [vmem:[#allocation5 + $0x3d8] sm:$0xff]
    %v211 = vld [vmem:[#allocation5 + $0x3e0] sm:$0xff]
    %v212 = vld [vmem:[#allocation5 + $0x3e8] sm:$0xff]
    %v213 = vld [vmem:[#allocation5 + $0x3f0] sm:$0xff]
    %v214 = vld [vmem:[#allocation5 + $0x3f8] sm:$0xff]
    %v215 = vld [vmem:[#allocation5 + $0x400] sm:$0xff]
    %v216 = vld [vmem:[#allocation5 + $0x408] sm:$0xff]
    %v217 = vld [vmem:[#allocation5 + $0x410] sm:$0xff]
    %v218 = vld [vmem:[#allocation5 + $0x418] sm:$0xff]
    %v219 = vld [vmem:[#allocation5 + $0x420] sm:$0xff]
    %v220 = vld [vmem:[#allocation5 + $0x428] sm:$0xff]
    %v221 = vld [vmem:[#allocation5 + $0x430] sm:$0xff]
    %v222 = vld [vmem:[#allocation5 + $0x438] sm:$0xff]
    %v223 = vld [vmem:[#allocation5 + $0x440] sm:$0xff]
    %v224 = vld [vmem:[#allocation5 + $0x448] sm:$0xff]
    %v225 = vld [vmem:[#allocation5 + $0x450] sm:$0xff]
    %v226 = vld [vmem:[#allocation5 + $0x458] sm:$0xff]
    %v227 = vld [vmem:[#allocation5 + $0x460] sm:$0xff]
    %v228 = vld [vmem:[#allocation5 + $0x468] sm:$0xff]
    %v229 = vld [vmem:[#allocation5 + $0x470] sm:$0xff]
    %v230 = vld [vmem:[#allocation5 + $0x478] sm:$0xff]
    %v231 = vld [vmem:[#allocation5 + $0x480] sm:$0xff]
    %v232 = vld [vmem:[#allocation5 + $0x488] sm:$0xff]
    %v233 = vld [vmem:[#allocation5 + $0x490] sm:$0xff]
    %v234 = vld [vmem:[#allocation5 + $0x498] sm:$0xff]
    %v235 = vld [vmem:[#allocation5 + $0x4a0] sm:$0xff]
    %v236 = vld [vmem:[#allocation5 + $0x4a8] sm:$0xff]
    %v237 = vld [vmem:[#allocation5 + $0x4b0] sm:$0xff]
    %v238 = vld [vmem:[#allocation5 + $0x4b8] sm:$0xff]
    %v239 = vld [vmem:[#allocation5 + $0x4c0] sm:$0xff]
    %v240 = vld [vmem:[#allocation5 + $0x4c8] sm:$0xff]
    %v241 = vld [vmem:[#allocation5 + $0x4d0] sm:$0xff]
    %v242 = vld [vmem:[#allocation5 + $0x4d8] sm:$0xff]
    %v243 = vld [vmem:[#allocation5 + $0x4e0] sm:$0xff]
    %v244 = vld [vmem:[#allocation5 + $0x4e8] sm:$0xff]
    %v245 = vld [vmem:[#allocation5 + $0x4f0] sm:$0xff]
    %v246 = vld [vmem:[#allocation5 + $0x4f8] sm:$0xff]
    %v247 = vld [vmem:[#allocation5 + $0x500] sm:$0xff]
    %v248 = vld [vmem:[#allocation5 + $0x508] sm:$0xff]
    %v249 = vld [vmem:[#allocation5 + $0x510] sm:$0xff]
    %v250 = vld [vmem:[#allocation5 + $0x518] sm:$0xff]
    %v251 = vld [vmem:[#allocation5 + $0x520] sm:$0xff]
    %v252 = vld [vmem:[#allocation5 + $0x528] sm:$0xff]
    %v253 = vld [vmem:[#allocation5 + $0x530] sm:$0xff]
    %v254 = vld [vmem:[#allocation5 + $0x538] sm:$0xff]
    %v255 = vld [vmem:[#allocation5 + $0x540] sm:$0xff]
    %v256 = vld [vmem:[#allocation5 + $0x548] sm:$0xff]
    %v257 = vld [vmem:[#allocation5 + $0x550] sm:$0xff]
    %v258 = vld [vmem:[#allocation5 + $0x558] sm:$0xff]
    %v259 = vld [vmem:[#allocation5 + $0x560] sm:$0xff]
    %v260 = vld [vmem:[#allocation5 + $0x568] sm:$0xff]
    %v261 = vld [vmem:[#allocation5 + $0x570] sm:$0xff]
    %v262 = vld [vmem:[#allocation5 + $0x578] sm:$0xff]
    %v263 = vld [vmem:[#allocation5 + $0x580] sm:$0xff]
    %v264 = vld [vmem:[#allocation5 + $0x588] sm:$0xff]
    %v265 = vld [vmem:[#allocation5 + $0x590] sm:$0xff]
    %v266 = vld [vmem:[#allocation5 + $0x598] sm:$0xff]
    %v267 = vld [vmem:[#allocation5 + $0x5a0] sm:$0xff]
    %v268 = vld [vmem:[#allocation5 + $0x5a8] sm:$0xff]
    %v269 = vld [vmem:[#allocation5 + $0x5b0] sm:$0xff]
    %v270 = vld [vmem:[#allocation5 + $0x5b8] sm:$0xff]
    %v271 = vld [vmem:[#allocation5 + $0x5c0] sm:$0xff]
    %v272 = vld [vmem:[#allocation5 + $0x5c8] sm:$0xff]
    %v273 = vld [vmem:[#allocation5 + $0x5d0] sm:$0xff]
    %v274 = vld [vmem:[#allocation5 + $0x5d8] sm:$0xff]
    %v275 = vld [vmem:[#allocation5 + $0x5e0] sm:$0xff]
    %v276 = vld [vmem:[#allocation5 + $0x5e8] sm:$0xff]
    %v277 = vld [vmem:[#allocation5 + $0x5f0] sm:$0xff]
    %v278 = vld [vmem:[#allocation5 + $0x5f8] sm:$0xff]
    %v279 = vld [vmem:[#allocation5 + $0x600] sm:$0xff]
    %v280 = vld [vmem:[#allocation5 + $0x608] sm:$0xff]
    %v281 = vld [vmem:[#allocation5 + $0x610] sm:$0xff]
    %v282 = vld [vmem:[#allocation5 + $0x618] sm:$0xff]
    %v283 = vld [vmem:[#allocation5 + $0x620] sm:$0xff]
    %v284 = vld [vmem:[#allocation5 + $0x628] sm:$0xff]
    %v285 = vld [vmem:[#allocation5 + $0x630] sm:$0xff]
    %v286 = vld [vmem:[#allocation5 + $0x638] sm:$0xff]
    %v287 = vld [vmem:[#allocation5 + $0x640] sm:$0xff]
    %v288 = vld [vmem:[#allocation5 + $0x648] sm:$0xff]
    %v289 = vld [vmem:[#allocation5 + $0x650] sm:$0xff]
    %v290 = vld [vmem:[#allocation5 + $0x658] sm:$0x77]
    %v291 = vld [vmem:[%s2] sm:$0x3]
    %v293 = vlaneseq
    %v294 = vshrl.u32 %v293, 7
    %v295 = vsub.s32 0, %v294
    %v296 = vrot.slane %v291, %v295
    %v297 = vlaneseq
    %v298 = vshrl.u32 %v297, 7
    %v299 = vsub.s32 1, %v298
    %v300 = vrot.slane %v291, %v299
    %v507 = vunpack.c.l.b16 %v87
    %v508 = vunpack.c.h.b16 %v87
    %v509 = vunpack.c.l.b16 %v88
    %v510 = vunpack.c.h.b16 %v88
    %v511 = vunpack.c.l.b16 %v89
    %v512 = vunpack.c.h.b16 %v89
    %v513 = vunpack.c.l.b16 %v90
    %v514 = vunpack.c.h.b16 %v90
    %v515 = vunpack.c.l.b16 %v91
    %v516 = vunpack.c.h.b16 %v91
    %v517 = vunpack.c.l.b16 %v92
    %v518 = vunpack.c.h.b16 %v92
    %v519 = vunpack.c.l.b16 %v93
    %v520 = vunpack.c.h.b16 %v93
    %v521 = vunpack.c.l.b16 %v94
    %v522 = vunpack.c.h.b16 %v94
    %v523 = vunpack.c.l.b16 %v95
    %v524 = vunpack.c.h.b16 %v95
    %v525 = vunpack.c.l.b16 %v96
    %v526 = vunpack.c.h.b16 %v96
    %v527 = vunpack.c.l.b16 %v97
    %v528 = vunpack.c.h.b16 %v97
    %v529 = vunpack.c.l.b16 %v98
    %v530 = vunpack.c.h.b16 %v98
    %v531 = vunpack.c.l.b16 %v99
    %v532 = vunpack.c.h.b16 %v99
    %v533 = vunpack.c.l.b16 %v100
    %v534 = vunpack.c.h.b16 %v100
    %v535 = vunpack.c.l.b16 %v101
    %v536 = vunpack.c.h.b16 %v101
    %v537 = vunpack.c.l.b16 %v102
    %v538 = vunpack.c.h.b16 %v102
    %v539 = vunpack.c.l.b16 %v103
    %v540 = vunpack.c.h.b16 %v103
    %v541 = vunpack.c.l.b16 %v104
    %v542 = vunpack.c.h.b16 %v104
    %v543 = vunpack.c.l.b16 %v105
    %v544 = vunpack.c.h.b16 %v105
    %v545 = vunpack.c.l.b16 %v106
    %v546 = vunpack.c.h.b16 %v106
    %v547 = vunpack.c.l.b16 %v107
    %v548 = vunpack.c.h.b16 %v107
    %v549 = vunpack.c.l.b16 %v108
    %v550 = vunpack.c.h.b16 %v108
    %v551 = vunpack.c.l.b16 %v109
    %v552 = vunpack.c.h.b16 %v109
    %v553 = vunpack.c.l.b16 %v110
    %v554 = vunpack.c.h.b16 %v110
    %v555 = vunpack.c.l.b16 %v111
    %v556 = vunpack.c.h.b16 %v111
    %v557 = vunpack.c.l.b16 %v112
    %v558 = vunpack.c.h.b16 %v112
    %v559 = vunpack.c.l.b16 %v113
    %v560 = vunpack.c.h.b16 %v113
    %v561 = vunpack.c.l.b16 %v114
    %v562 = vunpack.c.h.b16 %v114
    %v563 = vunpack.c.l.b16 %v115
    %v564 = vunpack.c.h.b16 %v115
    %v565 = vunpack.c.l.b16 %v116
    %v566 = vunpack.c.h.b16 %v116
    %v567 = vunpack.c.l.b16 %v117
    %v568 = vunpack.c.h.b16 %v117
    %v569 = vunpack.c.l.b16 %v118
    %v570 = vunpack.c.h.b16 %v118
    %v571 = vunpack.c.l.b16 %v119
    %v572 = vunpack.c.h.b16 %v119
    %v573 = vunpack.c.l.b16 %v120
    %v574 = vunpack.c.h.b16 %v120
    %v575 = vunpack.c.l.b16 %v121
    %v576 = vunpack.c.h.b16 %v121
    %v577 = vunpack.c.l.b16 %v122
    %v578 = vunpack.c.h.b16 %v122
    %v579 = vunpack.c.l.b16 %v123
    %v580 = vunpack.c.h.b16 %v123
    %v581 = vunpack.c.l.b16 %v124
    %v582 = vunpack.c.h.b16 %v124
    %v583 = vunpack.c.l.b16 %v125
    %v584 = vunpack.c.h.b16 %v125
    %v585 = vunpack.c.l.b16 %v126
    %v586 = vunpack.c.h.b16 %v126
    %v587 = vunpack.c.l.b16 %v127
    %v588 = vunpack.c.h.b16 %v127
    %v589 = vunpack.c.l.b16 %v128
    %v590 = vunpack.c.h.b16 %v128
    %v591 = vunpack.c.l.b16 %v129
    %v592 = vunpack.c.h.b16 %v129
    %v593 = vunpack.c.l.b16 %v130
    %v594 = vunpack.c.h.b16 %v130
    %v595 = vunpack.c.l.b16 %v131
    %v596 = vunpack.c.h.b16 %v131
    %v597 = vunpack.c.l.b16 %v132
    %v598 = vunpack.c.h.b16 %v132
    %v599 = vunpack.c.l.b16 %v133
    %v600 = vunpack.c.h.b16 %v133
    %v601 = vunpack.c.l.b16 %v134
    %v602 = vunpack.c.h.b16 %v134
    %v603 = vunpack.c.l.b16 %v135
    %v604 = vunpack.c.h.b16 %v135
    %v605 = vunpack.c.l.b16 %v136
    %v606 = vunpack.c.h.b16 %v136
    %v607 = vunpack.c.l.b16 %v137
    %v608 = vunpack.c.h.b16 %v137
    %v609 = vunpack.c.l.b16 %v138
    %v610 = vunpack.c.h.b16 %v138
    %v611 = vunpack.c.l.b16 %v139
    %v612 = vunpack.c.h.b16 %v139
    %v613 = vunpack.c.l.b16 %v140
    %v614 = vunpack.c.h.b16 %v140
    %v615 = vunpack.c.l.b16 %v141
    %v616 = vunpack.c.h.b16 %v141
    %v617 = vunpack.c.l.b16 %v142
    %v618 = vunpack.c.h.b16 %v142
    %v619 = vunpack.c.l.b16 %v143
    %v620 = vunpack.c.h.b16 %v143
    %v621 = vunpack.c.l.b16 %v144
    %v622 = vunpack.c.h.b16 %v144
    %v623 = vunpack.c.l.b16 %v145
    %v624 = vunpack.c.h.b16 %v145
    %v625 = vunpack.c.l.b16 %v146
    %v626 = vunpack.c.h.b16 %v146
    %v627 = vunpack.c.l.b16 %v147
    %v628 = vunpack.c.h.b16 %v147
    %v629 = vunpack.c.l.b16 %v148
    %v630 = vunpack.c.h.b16 %v148
    %v631 = vunpack.c.l.b16 %v149
    %v632 = vunpack.c.h.b16 %v149
    %v633 = vunpack.c.l.b16 %v150
    %v634 = vunpack.c.h.b16 %v150
    %v635 = vunpack.c.l.b16 %v151
    %v636 = vunpack.c.h.b16 %v151
    %v637 = vunpack.c.l.b16 %v152
    %v638 = vunpack.c.h.b16 %v152
    %v639 = vunpack.c.l.b16 %v153
    %v640 = vunpack.c.h.b16 %v153
    %v641 = vunpack.c.l.b16 %v154
    %v642 = vunpack.c.h.b16 %v154
    %v643 = vunpack.c.l.b16 %v155
    %v644 = vunpack.c.h.b16 %v155
    %v645 = vunpack.c.l.b16 %v156
    %v646 = vunpack.c.h.b16 %v156
    %v647 = vunpack.c.l.b16 %v157
    %v648 = vunpack.c.h.b16 %v157
    %v649 = vunpack.c.l.b16 %v158
    %v650 = vunpack.c.h.b16 %v158
    %v651 = vunpack.c.l.b16 %v159
    %v652 = vunpack.c.h.b16 %v159
    %v653 = vunpack.c.l.b16 %v160
    %v654 = vunpack.c.h.b16 %v160
    %v655 = vunpack.c.l.b16 %v161
    %v656 = vunpack.c.h.b16 %v161
    %v657 = vunpack.c.l.b16 %v162
    %v658 = vunpack.c.h.b16 %v162
    %v659 = vunpack.c.l.b16 %v163
    %v660 = vunpack.c.h.b16 %v163
    %v661 = vunpack.c.l.b16 %v164
    %v662 = vunpack.c.h.b16 %v164
    %v663 = vunpack.c.l.b16 %v165
    %v664 = vunpack.c.h.b16 %v165
    %v665 = vunpack.c.l.b16 %v166
    %v666 = vunpack.c.h.b16 %v166
    %v667 = vunpack.c.l.b16 %v167
    %v668 = vunpack.c.h.b16 %v167
    %v669 = vunpack.c.l.b16 %v168
    %v670 = vunpack.c.h.b16 %v168
    %v671 = vunpack.c.l.b16 %v169
    %v672 = vunpack.c.h.b16 %v169
    %v673 = vunpack.c.l.b16 %v170
    %v674 = vunpack.c.h.b16 %v170
    %v675 = vunpack.c.l.b16 %v171
    %v676 = vunpack.c.h.b16 %v171
    %v677 = vunpack.c.l.b16 %v172
    %v678 = vunpack.c.h.b16 %v172
    %v679 = vunpack.c.l.b16 %v173
    %v680 = vunpack.c.h.b16 %v173
    %v681 = vunpack.c.l.b16 %v174
    %v682 = vunpack.c.h.b16 %v174
    %v683 = vunpack.c.l.b16 %v175
    %v684 = vunpack.c.h.b16 %v175
    %v685 = vunpack.c.l.b16 %v176
    %v686 = vunpack.c.h.b16 %v176
    %v687 = vunpack.c.l.b16 %v177
    %v688 = vunpack.c.h.b16 %v177
    %v689 = vunpack.c.l.b16 %v178
    %v690 = vunpack.c.h.b16 %v178
    %v691 = vunpack.c.l.b16 %v179
    %v692 = vunpack.c.h.b16 %v179
    %v693 = vunpack.c.l.b16 %v180
    %v694 = vunpack.c.h.b16 %v180
    %v695 = vunpack.c.l.b16 %v181
    %v696 = vunpack.c.h.b16 %v181
    %v697 = vunpack.c.l.b16 %v182
    %v698 = vunpack.c.h.b16 %v182
    %v699 = vunpack.c.l.b16 %v183
    %v700 = vunpack.c.h.b16 %v183
    %v701 = vunpack.c.l.b16 %v184
    %v702 = vunpack.c.h.b16 %v184
    %v703 = vunpack.c.l.b16 %v185
    %v704 = vunpack.c.h.b16 %v185
    %v705 = vunpack.c.l.b16 %v186
    %v706 = vunpack.c.h.b16 %v186
    %v707 = vunpack.c.l.b16 %v187
    %v708 = vunpack.c.h.b16 %v187
    %v709 = vunpack.c.l.b16 %v188
    %v710 = vunpack.c.h.b16 %v188
    %v711 = vunpack.c.l.b16 %v189
    %v712 = vunpack.c.h.b16 %v189
    %v713 = vunpack.c.l.b16 %v190
    %v714 = vunpack.c.h.b16 %v190
    %v715 = vunpack.c.l.b16 %v191
    %v716 = vunpack.c.h.b16 %v191
    %v717 = vunpack.c.l.b16 %v192
    %v718 = vunpack.c.h.b16 %v192
    %v719 = vunpack.c.l.b16 %v193
    %v720 = vunpack.c.h.b16 %v193
    %v721 = vunpack.c.l.b16 %v194
    %v722 = vunpack.c.h.b16 %v194
    %v723 = vunpack.c.l.b16 %v195
    %v724 = vunpack.c.h.b16 %v195
    %v725 = vunpack.c.l.b16 %v196
    %v726 = vunpack.c.h.b16 %v196
    %v727 = vunpack.c.l.b16 %v197
    %v728 = vunpack.c.h.b16 %v197
    %v729 = vunpack.c.l.b16 %v198
    %v730 = vunpack.c.h.b16 %v198
    %v731 = vunpack.c.l.b16 %v199
    %v732 = vunpack.c.h.b16 %v199
    %v733 = vunpack.c.l.b16 %v200
    %v734 = vunpack.c.h.b16 %v200
    %v735 = vunpack.c.l.b16 %v201
    %v736 = vunpack.c.h.b16 %v201
    %v737 = vunpack.c.l.b16 %v202
    %v738 = vunpack.c.h.b16 %v202
    %v739 = vunpack.c.l.b16 %v203
    %v740 = vunpack.c.h.b16 %v203
    %v741 = vunpack.c.l.b16 %v204
    %v742 = vunpack.c.h.b16 %v204
    %v743 = vunpack.c.l.b16 %v205
    %v744 = vunpack.c.h.b16 %v205
    %v745 = vunpack.c.l.b16 %v206
    %v746 = vunpack.c.h.b16 %v206
    %v747 = vunpack.c.l.b16 %v207
    %v748 = vunpack.c.h.b16 %v207
    %v749 = vunpack.c.l.b16 %v208
    %v750 = vunpack.c.h.b16 %v208
    %v751 = vunpack.c.l.b16 %v209
    %v752 = vunpack.c.h.b16 %v209
    %v753 = vunpack.c.l.b16 %v210
    %v754 = vunpack.c.h.b16 %v210
    %v755 = vunpack.c.l.b16 %v211
    %v756 = vunpack.c.h.b16 %v211
    %v757 = vunpack.c.l.b16 %v212
    %v758 = vunpack.c.h.b16 %v212
    %v759 = vunpack.c.l.b16 %v213
    %v760 = vunpack.c.h.b16 %v213
    %v761 = vunpack.c.l.b16 %v214
    %v762 = vunpack.c.h.b16 %v214
    %v763 = vunpack.c.l.b16 %v215
    %v764 = vunpack.c.h.b16 %v215
    %v765 = vunpack.c.l.b16 %v216
    %v766 = vunpack.c.h.b16 %v216
    %v767 = vunpack.c.l.b16 %v217
    %v768 = vunpack.c.h.b16 %v217
    %v769 = vunpack.c.l.b16 %v218
    %v770 = vunpack.c.h.b16 %v218
    %v771 = vunpack.c.l.b16 %v219
    %v772 = vunpack.c.h.b16 %v219
    %v773 = vunpack.c.l.b16 %v220
    %v774 = vunpack.c.h.b16 %v220
    %v775 = vunpack.c.l.b16 %v221
    %v776 = vunpack.c.h.b16 %v221
    %v777 = vunpack.c.l.b16 %v222
    %v778 = vunpack.c.h.b16 %v222
    %v779 = vunpack.c.l.b16 %v223
    %v780 = vunpack.c.h.b16 %v223
    %v781 = vunpack.c.l.b16 %v224
    %v782 = vunpack.c.h.b16 %v224
    %v783 = vunpack.c.l.b16 %v225
    %v784 = vunpack.c.h.b16 %v225
    %v785 = vunpack.c.l.b16 %v226
    %v786 = vunpack.c.h.b16 %v226
    %v787 = vunpack.c.l.b16 %v227
    %v788 = vunpack.c.h.b16 %v227
    %v789 = vunpack.c.l.b16 %v228
    %v790 = vunpack.c.h.b16 %v228
    %v791 = vunpack.c.l.b16 %v229
    %v792 = vunpack.c.h.b16 %v229
    %v793 = vunpack.c.l.b16 %v230
    %v794 = vunpack.c.h.b16 %v230
    %v795 = vunpack.c.l.b16 %v231
    %v796 = vunpack.c.h.b16 %v231
    %v797 = vunpack.c.l.b16 %v232
    %v798 = vunpack.c.h.b16 %v232
    %v799 = vunpack.c.l.b16 %v233
    %v800 = vunpack.c.h.b16 %v233
    %v801 = vunpack.c.l.b16 %v234
    %v802 = vunpack.c.h.b16 %v234
    %v803 = vunpack.c.l.b16 %v235
    %v804 = vunpack.c.h.b16 %v235
    %v805 = vunpack.c.l.b16 %v236
    %v806 = vunpack.c.h.b16 %v236
    %v807 = vunpack.c.l.b16 %v237
    %v808 = vunpack.c.h.b16 %v237
    %v809 = vunpack.c.l.b16 %v238
    %v810 = vunpack.c.h.b16 %v238
    %v811 = vunpack.c.l.b16 %v239
    %v812 = vunpack.c.h.b16 %v239
    %v813 = vunpack.c.l.b16 %v240
    %v814 = vunpack.c.h.b16 %v240
    %v815 = vunpack.c.l.b16 %v241
    %v816 = vunpack.c.h.b16 %v241
    %v817 = vunpack.c.l.b16 %v242
    %v818 = vunpack.c.h.b16 %v242
    %v819 = vunpack.c.l.b16 %v243
    %v820 = vunpack.c.h.b16 %v243
    %v821 = vunpack.c.l.b16 %v244
    %v822 = vunpack.c.h.b16 %v244
    %v823 = vunpack.c.l.b16 %v245
    %v824 = vunpack.c.h.b16 %v245
    %v825 = vunpack.c.l.b16 %v246
    %v826 = vunpack.c.h.b16 %v246
    %v827 = vunpack.c.l.b16 %v247
    %v828 = vunpack.c.h.b16 %v247
    %v829 = vunpack.c.l.b16 %v248
    %v830 = vunpack.c.h.b16 %v248
    %v831 = vunpack.c.l.b16 %v249
    %v832 = vunpack.c.h.b16 %v249
    %v833 = vunpack.c.l.b16 %v250
    %v834 = vunpack.c.h.b16 %v250
    %v835 = vunpack.c.l.b16 %v251
    %v836 = vunpack.c.h.b16 %v251
    %v837 = vunpack.c.l.b16 %v252
    %v838 = vunpack.c.h.b16 %v252
    %v839 = vunpack.c.l.b16 %v253
    %v840 = vunpack.c.h.b16 %v253
    %v841 = vunpack.c.l.b16 %v254
    %v842 = vunpack.c.h.b16 %v254
    %v843 = vunpack.c.l.b16 %v255
    %v844 = vunpack.c.h.b16 %v255
    %v845 = vunpack.c.l.b16 %v256
    %v846 = vunpack.c.h.b16 %v256
    %v847 = vunpack.c.l.b16 %v257
    %v848 = vunpack.c.h.b16 %v257
    %v849 = vunpack.c.l.b16 %v258
    %v850 = vunpack.c.h.b16 %v258
    %v851 = vunpack.c.l.b16 %v259
    %v852 = vunpack.c.h.b16 %v259
    %v853 = vunpack.c.l.b16 %v260
    %v854 = vunpack.c.h.b16 %v260
    %v855 = vunpack.c.l.b16 %v261
    %v856 = vunpack.c.h.b16 %v261
    %v857 = vunpack.c.l.b16 %v262
    %v858 = vunpack.c.h.b16 %v262
    %v859 = vunpack.c.l.b16 %v263
    %v860 = vunpack.c.h.b16 %v263
    %v861 = vunpack.c.l.b16 %v264
    %v862 = vunpack.c.h.b16 %v264
    %v863 = vunpack.c.l.b16 %v265
    %v864 = vunpack.c.h.b16 %v265
    %v865 = vunpack.c.l.b16 %v266
    %v866 = vunpack.c.h.b16 %v266
    %v867 = vunpack.c.l.b16 %v267
    %v868 = vunpack.c.h.b16 %v267
    %v869 = vunpack.c.l.b16 %v268
    %v870 = vunpack.c.h.b16 %v268
    %v871 = vunpack.c.l.b16 %v269
    %v872 = vunpack.c.h.b16 %v269
    %v873 = vunpack.c.l.b16 %v270
    %v874 = vunpack.c.h.b16 %v270
    %v875 = vunpack.c.l.b16 %v271
    %v876 = vunpack.c.h.b16 %v271
    %v877 = vunpack.c.l.b16 %v272
    %v878 = vunpack.c.h.b16 %v272
    %v879 = vunpack.c.l.b16 %v273
    %v880 = vunpack.c.h.b16 %v273
    %v881 = vunpack.c.l.b16 %v274
    %v882 = vunpack.c.h.b16 %v274
    %v883 = vunpack.c.l.b16 %v275
    %v884 = vunpack.c.h.b16 %v275
    %v885 = vunpack.c.l.b16 %v276
    %v886 = vunpack.c.h.b16 %v276
    %v887 = vunpack.c.l.b16 %v277
    %v888 = vunpack.c.h.b16 %v277
    %v889 = vunpack.c.l.b16 %v278
    %v890 = vunpack.c.h.b16 %v278
    %v891 = vunpack.c.l.b16 %v279
    %v892 = vunpack.c.h.b16 %v279
    %v893 = vunpack.c.l.b16 %v280
    %v894 = vunpack.c.h.b16 %v280
    %v895 = vunpack.c.l.b16 %v281
    %v896 = vunpack.c.h.b16 %v281
    %v897 = vunpack.c.l.b16 %v282
    %v898 = vunpack.c.h.b16 %v282
    %v899 = vunpack.c.l.b16 %v283
    %v900 = vunpack.c.h.b16 %v283
    %v901 = vunpack.c.l.b16 %v284
    %v902 = vunpack.c.h.b16 %v284
    %v903 = vunpack.c.l.b16 %v285
    %v904 = vunpack.c.h.b16 %v285
    %v905 = vunpack.c.l.b16 %v286
    %v906 = vunpack.c.h.b16 %v286
    %v907 = vunpack.c.l.b16 %v287
    %v908 = vunpack.c.h.b16 %v287
    %v909 = vunpack.c.l.b16 %v288
    %v910 = vunpack.c.h.b16 %v288
    %v911 = vunpack.c.l.b16 %v289
    %v912 = vunpack.c.h.b16 %v289
    %v913 = vunpack.c.l.b16 %v290
    %v914 = vunpack.c.h.b16 %v290
    %v915 = vpack.c.b16 %v509, %v507
    %v916 = vpack.c.b16 %v510, %v508
    %v917 = vpack.c.b16 %v513, %v511
    %v918 = vpack.c.b16 %v514, %v512
    %v919 = vpack.c.b16 %v517, %v515
    %v920 = vpack.c.b16 %v518, %v516
    %v921 = vpack.c.b16 %v521, %v519
    %v922 = vpack.c.b16 %v522, %v520
    %v923 = vpack.c.b16 %v525, %v523
    %v924 = vpack.c.b16 %v526, %v524
    %v925 = vpack.c.b16 %v529, %v527
    %v926 = vpack.c.b16 %v530, %v528
    %v927 = vpack.c.b16 %v533, %v531
    %v928 = vpack.c.b16 %v534, %v532
    %v929 = vpack.c.b16 %v537, %v535
    %v930 = vpack.c.b16 %v538, %v536
    %v931 = vpack.c.b16 %v541, %v539
    %v932 = vpack.c.b16 %v542, %v540
    %v933 = vpack.c.b16 %v545, %v543
    %v934 = vpack.c.b16 %v546, %v544
    %v935 = vpack.c.b16 %v549, %v547
    %v936 = vpack.c.b16 %v550, %v548
    %v937 = vpack.c.b16 %v553, %v551
    %v938 = vpack.c.b16 %v554, %v552
    %v939 = vpack.c.b16 %v557, %v555
    %v940 = vpack.c.b16 %v558, %v556
    %v941 = vpack.c.b16 %v561, %v559
    %v942 = vpack.c.b16 %v562, %v560
    %v943 = vpack.c.b16 %v565, %v563
    %v944 = vpack.c.b16 %v566, %v564
    %v945 = vpack.c.b16 %v569, %v567
    %v946 = vpack.c.b16 %v570, %v568
    %v947 = vpack.c.b16 %v573, %v571
    %v948 = vpack.c.b16 %v574, %v572
    %v949 = vpack.c.b16 %v577, %v575
    %v950 = vpack.c.b16 %v578, %v576
    %v951 = vpack.c.b16 %v581, %v579
    %v952 = vpack.c.b16 %v582, %v580
    %v953 = vpack.c.b16 %v585, %v583
    %v954 = vpack.c.b16 %v586, %v584
    %v955 = vpack.c.b16 %v589, %v587
    %v956 = vpack.c.b16 %v590, %v588
    %v957 = vpack.c.b16 %v593, %v591
    %v958 = vpack.c.b16 %v594, %v592
    %v959 = vpack.c.b16 %v597, %v595
    %v960 = vpack.c.b16 %v598, %v596
    %v961 = vpack.c.b16 %v601, %v599
    %v962 = vpack.c.b16 %v602, %v600
    %v963 = vpack.c.b16 %v605, %v603
    %v964 = vpack.c.b16 %v606, %v604
    %v965 = vpack.c.b16 %v609, %v607
    %v966 = vpack.c.b16 %v610, %v608
    %v967 = vpack.c.b16 %v613, %v611
    %v968 = vpack.c.b16 %v614, %v612
    %v969 = vpack.c.b16 %v617, %v615
    %v970 = vpack.c.b16 %v618, %v616
    %v971 = vpack.c.b16 %v621, %v619
    %v972 = vpack.c.b16 %v622, %v620
    %v973 = vpack.c.b16 %v625, %v623
    %v974 = vpack.c.b16 %v626, %v624
    %v975 = vpack.c.b16 %v629, %v627
    %v976 = vpack.c.b16 %v630, %v628
    %v977 = vpack.c.b16 %v633, %v631
    %v978 = vpack.c.b16 %v634, %v632
    %v979 = vpack.c.b16 %v637, %v635
    %v980 = vpack.c.b16 %v638, %v636
    %v981 = vpack.c.b16 %v641, %v639
    %v982 = vpack.c.b16 %v642, %v640
    %v983 = vpack.c.b16 %v645, %v643
    %v984 = vpack.c.b16 %v646, %v644
    %v985 = vpack.c.b16 %v649, %v647
    %v986 = vpack.c.b16 %v650, %v648
    %v987 = vpack.c.b16 %v653, %v651
    %v988 = vpack.c.b16 %v654, %v652
    %v989 = vpack.c.b16 %v657, %v655
    %v990 = vpack.c.b16 %v658, %v656
    %v991 = vpack.c.b16 %v661, %v659
    %v992 = vpack.c.b16 %v662, %v660
    %v993 = vpack.c.b16 %v665, %v663
    %v994 = vpack.c.b16 %v666, %v664
    %v995 = vpack.c.b16 %v669, %v667
    %v996 = vpack.c.b16 %v670, %v668
    %v997 = vpack.c.b16 %v673, %v671
    %v998 = vpack.c.b16 %v674, %v672
    %v999 = vpack.c.b16 %v677, %v675
    %v1000 = vpack.c.b16 %v678, %v676
    %v1001 = vpack.c.b16 %v681, %v679
    %v1002 = vpack.c.b16 %v682, %v680
    %v1003 = vpack.c.b16 %v685, %v683
    %v1004 = vpack.c.b16 %v686, %v684
    %v1005 = vpack.c.b16 %v689, %v687
    %v1006 = vpack.c.b16 %v690, %v688
    %v1007 = vpack.c.b16 %v693, %v691
    %v1008 = vpack.c.b16 %v694, %v692
    %v1009 = vpack.c.b16 %v697, %v695
    %v1010 = vpack.c.b16 %v698, %v696
    %v1011 = vpack.c.b16 %v701, %v699
    %v1012 = vpack.c.b16 %v702, %v700
    %v1013 = vpack.c.b16 %v705, %v703
    %v1014 = vpack.c.b16 %v706, %v704
    %v1015 = vpack.c.b16 %v709, %v707
    %v1016 = vpack.c.b16 %v710, %v708
    %v1017 = vpack.c.b16 %v713, %v711
    %v1018 = vpack.c.b16 %v714, %v712
    %v1019 = vpack.c.b16 %v717, %v715
    %v1020 = vpack.c.b16 %v718, %v716
    %v1021 = vpack.c.b16 %v721, %v719
    %v1022 = vpack.c.b16 %v722, %v720
    %v1023 = vpack.c.b16 %v725, %v723
    %v1024 = vpack.c.b16 %v726, %v724
    %v1025 = vpack.c.b16 %v729, %v727
    %v1026 = vpack.c.b16 %v730, %v728
    %v1027 = vpack.c.b16 %v733, %v731
    %v1028 = vpack.c.b16 %v734, %v732
    %v1029 = vpack.c.b16 %v737, %v735
    %v1030 = vpack.c.b16 %v738, %v736
    %v1031 = vpack.c.b16 %v741, %v739
    %v1032 = vpack.c.b16 %v742, %v740
    %v1033 = vpack.c.b16 %v745, %v743
    %v1034 = vpack.c.b16 %v746, %v744
    %v1035 = vpack.c.b16 %v749, %v747
    %v1036 = vpack.c.b16 %v750, %v748
    %v1037 = vpack.c.b16 %v753, %v751
    %v1038 = vpack.c.b16 %v754, %v752
    %v1039 = vpack.c.b16 %v757, %v755
    %v1040 = vpack.c.b16 %v758, %v756
    %v1041 = vpack.c.b16 %v761, %v759
    %v1042 = vpack.c.b16 %v762, %v760
    %v1043 = vpack.c.b16 %v765, %v763
    %v1044 = vpack.c.b16 %v766, %v764
    %v1045 = vpack.c.b16 %v769, %v767
    %v1046 = vpack.c.b16 %v770, %v768
    %v1047 = vpack.c.b16 %v773, %v771
    %v1048 = vpack.c.b16 %v774, %v772
    %v1049 = vpack.c.b16 %v777, %v775
    %v1050 = vpack.c.b16 %v778, %v776
    %v1051 = vpack.c.b16 %v781, %v779
    %v1052 = vpack.c.b16 %v782, %v780
    %v1053 = vpack.c.b16 %v785, %v783
    %v1054 = vpack.c.b16 %v786, %v784
    %v1055 = vpack.c.b16 %v789, %v787
    %v1056 = vpack.c.b16 %v790, %v788
    %v1057 = vpack.c.b16 %v793, %v791
    %v1058 = vpack.c.b16 %v794, %v792
    %v1059 = vpack.c.b16 %v797, %v795
    %v1060 = vpack.c.b16 %v798, %v796
    %v1061 = vpack.c.b16 %v801, %v799
    %v1062 = vpack.c.b16 %v802, %v800
    %v1063 = vpack.c.b16 %v805, %v803
    %v1064 = vpack.c.b16 %v806, %v804
    %v1065 = vpack.c.b16 %v809, %v807
    %v1066 = vpack.c.b16 %v810, %v808
    %v1067 = vpack.c.b16 %v813, %v811
    %v1068 = vpack.c.b16 %v814, %v812
    %v1069 = vpack.c.b16 %v817, %v815
    %v1070 = vpack.c.b16 %v818, %v816
    %v1071 = vpack.c.b16 %v821, %v819
    %v1072 = vpack.c.b16 %v822, %v820
    %v1073 = vpack.c.b16 %v825, %v823
    %v1074 = vpack.c.b16 %v826, %v824
    %v1075 = vpack.c.b16 %v829, %v827
    %v1076 = vpack.c.b16 %v830, %v828
    %v1077 = vpack.c.b16 %v833, %v831
    %v1078 = vpack.c.b16 %v834, %v832
    %v1079 = vpack.c.b16 %v837, %v835
    %v1080 = vpack.c.b16 %v838, %v836
    %v1081 = vpack.c.b16 %v841, %v839
    %v1082 = vpack.c.b16 %v842, %v840
    %v1083 = vpack.c.b16 %v845, %v843
    %v1084 = vpack.c.b16 %v846, %v844
    %v1085 = vpack.c.b16 %v849, %v847
    %v1086 = vpack.c.b16 %v850, %v848
    %v1087 = vpack.c.b16 %v853, %v851
    %v1088 = vpack.c.b16 %v854, %v852
    %v1089 = vpack.c.b16 %v857, %v855
    %v1090 = vpack.c.b16 %v858, %v856
    %v1091 = vpack.c.b16 %v861, %v859
    %v1092 = vpack.c.b16 %v862, %v860
    %v1093 = vpack.c.b16 %v865, %v863
    %v1094 = vpack.c.b16 %v866, %v864
    %v1095 = vpack.c.b16 %v869, %v867
    %v1096 = vpack.c.b16 %v870, %v868
    %v1097 = vpack.c.b16 %v873, %v871
    %v1098 = vpack.c.b16 %v874, %v872
    %v1099 = vpack.c.b16 %v877, %v875
    %v1100 = vpack.c.b16 %v878, %v876
    %v1101 = vpack.c.b16 %v881, %v879
    %v1102 = vpack.c.b16 %v882, %v880
    %v1103 = vpack.c.b16 %v885, %v883
    %v1104 = vpack.c.b16 %v886, %v884
    %v1105 = vpack.c.b16 %v889, %v887
    %v1106 = vpack.c.b16 %v890, %v888
    %v1107 = vpack.c.b16 %v893, %v891
    %v1108 = vpack.c.b16 %v894, %v892
    %v1109 = vpack.c.b16 %v897, %v895
    %v1110 = vpack.c.b16 %v898, %v896
    %v1111 = vpack.c.b16 %v901, %v899
    %v1112 = vpack.c.b16 %v902, %v900
    %v1113 = vpack.c.b16 %v905, %v903
    %v1114 = vpack.c.b16 %v906, %v904
    %v1115 = vpack.c.b16 %v909, %v907
    %v1116 = vpack.c.b16 %v910, %v908
    %v1117 = vpack.c.b16 %v913, %v911
    %v1118 = vpack.c.b16 %v914, %v912
    %vm1321 = vcmask 760832
    %v1323 = vsel %vm1321, %v86, 0
    %vm1325 = vcmask 1045504
    %vm1326 = vcmask 1046528
    %v1327 = vsel %vm1325, 4294967295, 65535
    %v1328 = vsel %vm1326, %v1327, 0
    %v1330 = vand.u32 %v1117, %v1328
    %v1333 = vand.u32 %v1118, %v1328
    %1335 = vmatprep.subr.bf16.mxu0 %v930
    %1336 = vmatpush1.bf16.msra.mxu0 %v929
    %1337 = vmatprep.subr.bf16.mxu0 %v928
    %1338 = vmatpush1.bf16.msra.mxu0 %v927
    %1339 = vmatprep.subr.bf16.mxu0 %v926
    %1340 = vmatpush1.bf16.msra.mxu0 %v925
    %1341 = vmatprep.subr.bf16.mxu0 %v924
    %1342 = vmatpush1.bf16.msra.mxu0 %v923
    %1343 = vmatprep.subr.bf16.mxu0 %v922
    %1344 = vmatpush1.bf16.msra.mxu0 %v921
    %1345 = vmatprep.subr.bf16.mxu0 %v920
    %1346 = vmatpush1.bf16.msra.mxu0 %v919
    %1347 = vmatprep.subr.bf16.mxu0 %v918
    %1348 = vmatpush1.bf16.msra.mxu0 %v917
    %1349 = vmatprep.subr.bf16.mxu0 %v916
    %1350 = vmatpush1.bf16.msra.mxu0 %v915
    %1351 = vmatprep.subr.bf16.mxu0 %v946
    %1352 = vmatpush2.bf16.msra.mxu0 %v945
    %1353 = vmatprep.subr.bf16.mxu0 %v944
    %1354 = vmatpush2.bf16.msra.mxu0 %v943
    %1355 = vmatprep.subr.bf16.mxu0 %v942
    %1356 = vmatpush2.bf16.msra.mxu0 %v941
    %1357 = vmatprep.subr.bf16.mxu0 %v940
    %1358 = vmatpush2.bf16.msra.mxu0 %v939
    %1359 = vmatprep.subr.bf16.mxu0 %v938
    %1360 = vmatpush2.bf16.msra.mxu0 %v937
    %1361 = vmatprep.subr.bf16.mxu0 %v936
    %1362 = vmatpush2.bf16.msra.mxu0 %v935
    %1363 = vmatprep.subr.bf16.mxu0 %v934
    %1364 = vmatpush2.bf16.msra.mxu0 %v933
    %1365 = vmatprep.subr.bf16.mxu0 %v932
    %1366 = vmatpush2.bf16.msra.mxu0 %v931
    %1367 = vmatprep.mubr.bf16.mxu0 %v75
    %1368 = vmatmul.mubr.bf16.gmra.mxu0 %v74
    %v1369 = vpop.f32.mrf.mxu0
    %v1370 = vadd.f32 %v296, %v1369
    %v1371 = vpop.f32.mrf.mxu0
    %v1372 = vadd.f32 %v300, %v1371
    %v1373 = vpop.f32.mrf.mxu0
    %v1374 = vpop.f32.mrf.mxu0
    %1375 = vdwg.mxu0
    %1376 = vmatprep.subr.bf16.mxu0 %v962
    %1377 = vmatpush1.bf16.msra.mxu0 %v961
    %1378 = vmatprep.subr.bf16.mxu0 %v960
    %1379 = vmatpush1.bf16.msra.mxu0 %v959
    %1380 = vmatprep.subr.bf16.mxu0 %v958
    %1381 = vmatpush1.bf16.msra.mxu0 %v957
    %1382 = vmatprep.subr.bf16.mxu0 %v956
    %1383 = vmatpush1.bf16.msra.mxu0 %v955
    %1384 = vmatprep.subr.bf16.mxu0 %v954
    %1385 = vmatpush1.bf16.msra.mxu0 %v953
    %1386 = vmatprep.subr.bf16.mxu0 %v952
    %1387 = vmatpush1.bf16.msra.mxu0 %v951
    %1388 = vmatprep.subr.bf16.mxu0 %v950
    %1389 = vmatpush1.bf16.msra.mxu0 %v949
    %1390 = vmatprep.subr.bf16.mxu0 %v948
    %1391 = vmatpush1.bf16.msra.mxu0 %v947
    %1392 = vmatprep.subr.bf16.mxu0 %v978
    %1393 = vmatpush2.bf16.msra.mxu0 %v977
    %1394 = vmatprep.subr.bf16.mxu0 %v976
    %1395 = vmatpush2.bf16.msra.mxu0 %v975
    %1396 = vmatprep.subr.bf16.mxu0 %v974
    %1397 = vmatpush2.bf16.msra.mxu0 %v973
    %1398 = vmatprep.subr.bf16.mxu0 %v972
    %1399 = vmatpush2.bf16.msra.mxu0 %v971
    %1400 = vmatprep.subr.bf16.mxu0 %v970
    %1401 = vmatpush2.bf16.msra.mxu0 %v969
    %1402 = vmatprep.subr.bf16.mxu0 %v968
    %1403 = vmatpush2.bf16.msra.mxu0 %v967
    %1404 = vmatprep.subr.bf16.mxu0 %v966
    %1405 = vmatpush2.bf16.msra.mxu0 %v965
    %1406 = vmatprep.subr.bf16.mxu0 %v964
    %1407 = vmatpush2.bf16.msra.mxu0 %v963
    %1408 = vmatprep.mubr.bf16.mxu0 %v77
    %1409 = vmatmul.mubr.bf16.gmra.mxu0 %v76
    %v1410 = vpop.f32.mrf.mxu0
    %v1411 = vadd.f32 %v1370, %v1410
    %v1412 = vpop.f32.mrf.mxu0
    %v1413 = vadd.f32 %v1372, %v1412
    %v1414 = vpop.f32.mrf.mxu0
    %v1415 = vpop.f32.mrf.mxu0
    %1416 = vdwg.mxu0
    %1417 = vmatprep.subr.bf16.mxu0 %v994
    %1418 = vmatpush1.bf16.msra.mxu0 %v993
    %1419 = vmatprep.subr.bf16.mxu0 %v992
    %1420 = vmatpush1.bf16.msra.mxu0 %v991
    %1421 = vmatprep.subr.bf16.mxu0 %v990
    %1422 = vmatpush1.bf16.msra.mxu0 %v989
    %1423 = vmatprep.subr.bf16.mxu0 %v988
    %1424 = vmatpush1.bf16.msra.mxu0 %v987
    %1425 = vmatprep.subr.bf16.mxu0 %v986
    %1426 = vmatpush1.bf16.msra.mxu0 %v985
    %1427 = vmatprep.subr.bf16.mxu0 %v984
    %1428 = vmatpush1.bf16.msra.mxu0 %v983
    %1429 = vmatprep.subr.bf16.mxu0 %v982
    %1430 = vmatpush1.bf16.msra.mxu0 %v981
    %1431 = vmatprep.subr.bf16.mxu0 %v980
    %1432 = vmatpush1.bf16.msra.mxu0 %v979
    %1433 = vmatprep.subr.bf16.mxu0 %v1010
    %1434 = vmatpush2.bf16.msra.mxu0 %v1009
    %1435 = vmatprep.subr.bf16.mxu0 %v1008
    %1436 = vmatpush2.bf16.msra.mxu0 %v1007
    %1437 = vmatprep.subr.bf16.mxu0 %v1006
    %1438 = vmatpush2.bf16.msra.mxu0 %v1005
    %1439 = vmatprep.subr.bf16.mxu0 %v1004
    %1440 = vmatpush2.bf16.msra.mxu0 %v1003
    %1441 = vmatprep.subr.bf16.mxu0 %v1002
    %1442 = vmatpush2.bf16.msra.mxu0 %v1001
    %1443 = vmatprep.subr.bf16.mxu0 %v1000
    %1444 = vmatpush2.bf16.msra.mxu0 %v999
    %1445 = vmatprep.subr.bf16.mxu0 %v998
    %1446 = vmatpush2.bf16.msra.mxu0 %v997
    %1447 = vmatprep.subr.bf16.mxu0 %v996
    %1448 = vmatpush2.bf16.msra.mxu0 %v995
    %1449 = vmatprep.mubr.bf16.mxu0 %v79
    %1450 = vmatmul.mubr.bf16.gmra.mxu0 %v78
    %v1451 = vpop.f32.mrf.mxu0
    %v1452 = vadd.f32 %v1411, %v1451
    %v1453 = vpop.f32.mrf.mxu0
    %v1454 = vadd.f32 %v1413, %v1453
    %v1455 = vpop.f32.mrf.mxu0
    %v1456 = vpop.f32.mrf.mxu0
    %1457 = vdwg.mxu0
    %1458 = vmatprep.subr.bf16.mxu0 %v1026
    %1459 = vmatpush1.bf16.msra.mxu0 %v1025
    %1460 = vmatprep.subr.bf16.mxu0 %v1024
    %1461 = vmatpush1.bf16.msra.mxu0 %v1023
    %1462 = vmatprep.subr.bf16.mxu0 %v1022
    %1463 = vmatpush1.bf16.msra.mxu0 %v1021
    %1464 = vmatprep.subr.bf16.mxu0 %v1020
    %1465 = vmatpush1.bf16.msra.mxu0 %v1019
    %1466 = vmatprep.subr.bf16.mxu0 %v1018
    %1467 = vmatpush1.bf16.msra.mxu0 %v1017
    %1468 = vmatprep.subr.bf16.mxu0 %v1016
    %1469 = vmatpush1.bf16.msra.mxu0 %v1015
    %1470 = vmatprep.subr.bf16.mxu0 %v1014
    %1471 = vmatpush1.bf16.msra.mxu0 %v1013
    %1472 = vmatprep.subr.bf16.mxu0 %v1012
    %1473 = vmatpush1.bf16.msra.mxu0 %v1011
    %1474 = vmatprep.subr.bf16.mxu0 %v1042
    %1475 = vmatpush2.bf16.msra.mxu0 %v1041
    %1476 = vmatprep.subr.bf16.mxu0 %v1040
    %1477 = vmatpush2.bf16.msra.mxu0 %v1039
    %1478 = vmatprep.subr.bf16.mxu0 %v1038
    %1479 = vmatpush2.bf16.msra.mxu0 %v1037
    %1480 = vmatprep.subr.bf16.mxu0 %v1036
    %1481 = vmatpush2.bf16.msra.mxu0 %v1035
    %1482 = vmatprep.subr.bf16.mxu0 %v1034
    %1483 = vmatpush2.bf16.msra.mxu0 %v1033
    %1484 = vmatprep.subr.bf16.mxu0 %v1032
    %1485 = vmatpush2.bf16.msra.mxu0 %v1031
    %1486 = vmatprep.subr.bf16.mxu0 %v1030
    %1487 = vmatpush2.bf16.msra.mxu0 %v1029
    %1488 = vmatprep.subr.bf16.mxu0 %v1028
    %1489 = vmatpush2.bf16.msra.mxu0 %v1027
    %1490 = vmatprep.mubr.bf16.mxu0 %v81
    %1491 = vmatmul.mubr.bf16.gmra.mxu0 %v80
    %v1492 = vpop.f32.mrf.mxu0
    %v1493 = vadd.f32 %v1452, %v1492
    %v1494 = vpop.f32.mrf.mxu0
    %v1495 = vadd.f32 %v1454, %v1494
    %v1496 = vpop.f32.mrf.mxu0
    %v1497 = vpop.f32.mrf.mxu0
    %1498 = vdwg.mxu0
    %1499 = vmatprep.subr.bf16.mxu0 %v1058
    %1500 = vmatpush1.bf16.msra.mxu0 %v1057
    %1501 = vmatprep.subr.bf16.mxu0 %v1056
    %1502 = vmatpush1.bf16.msra.mxu0 %v1055
    %1503 = vmatprep.subr.bf16.mxu0 %v1054
    %1504 = vmatpush1.bf16.msra.mxu0 %v1053
    %1505 = vmatprep.subr.bf16.mxu0 %v1052
    %1506 = vmatpush1.bf16.msra.mxu0 %v1051
    %1507 = vmatprep.subr.bf16.mxu0 %v1050
    %1508 = vmatpush1.bf16.msra.mxu0 %v1049
    %1509 = vmatprep.subr.bf16.mxu0 %v1048
    %1510 = vmatpush1.bf16.msra.mxu0 %v1047
    %1511 = vmatprep.subr.bf16.mxu0 %v1046
    %1512 = vmatpush1.bf16.msra.mxu0 %v1045
    %1513 = vmatprep.subr.bf16.mxu0 %v1044
    %1514 = vmatpush1.bf16.msra.mxu0 %v1043
    %1515 = vmatprep.subr.bf16.mxu0 %v1074
    %1516 = vmatpush2.bf16.msra.mxu0 %v1073
    %1517 = vmatprep.subr.bf16.mxu0 %v1072
    %1518 = vmatpush2.bf16.msra.mxu0 %v1071
    %1519 = vmatprep.subr.bf16.mxu0 %v1070
    %1520 = vmatpush2.bf16.msra.mxu0 %v1069
    %1521 = vmatprep.subr.bf16.mxu0 %v1068
    %1522 = vmatpush2.bf16.msra.mxu0 %v1067
    %1523 = vmatprep.subr.bf16.mxu0 %v1066
    %1524 = vmatpush2.bf16.msra.mxu0 %v1065
    %1525 = vmatprep.subr.bf16.mxu0 %v1064
    %1526 = vmatpush2.bf16.msra.mxu0 %v1063
    %1527 = vmatprep.subr.bf16.mxu0 %v1062
    %1528 = vmatpush2.bf16.msra.mxu0 %v1061
    %1529 = vmatprep.subr.bf16.mxu0 %v1060
    %1530 = vmatpush2.bf16.msra.mxu0 %v1059
    %1531 = vmatprep.mubr.bf16.mxu0 %v83
    %1532 = vmatmul.mubr.bf16.gmra.mxu0 %v82
    %v1533 = vpop.f32.mrf.mxu0
    %v1534 = vadd.f32 %v1493, %v1533
    %v1535 = vpop.f32.mrf.mxu0
    %v1536 = vadd.f32 %v1495, %v1535
    %v1537 = vpop.f32.mrf.mxu0
    %v1538 = vpop.f32.mrf.mxu0
    %1539 = vdwg.mxu0
    %1540 = vmatprep.subr.bf16.mxu0 %v1090
    %1541 = vmatpush1.bf16.msra.mxu0 %v1089
    %1542 = vmatprep.subr.bf16.mxu0 %v1088
    %1543 = vmatpush1.bf16.msra.mxu0 %v1087
    %1544 = vmatprep.subr.bf16.mxu0 %v1086
    %1545 = vmatpush1.bf16.msra.mxu0 %v1085
    %1546 = vmatprep.subr.bf16.mxu0 %v1084
    %1547 = vmatpush1.bf16.msra.mxu0 %v1083
    %1548 = vmatprep.subr.bf16.mxu0 %v1082
    %1549 = vmatpush1.bf16.msra.mxu0 %v1081
    %1550 = vmatprep.subr.bf16.mxu0 %v1080
    %1551 = vmatpush1.bf16.msra.mxu0 %v1079
    %1552 = vmatprep.subr.bf16.mxu0 %v1078
    %1553 = vmatpush1.bf16.msra.mxu0 %v1077
    %1554 = vmatprep.subr.bf16.mxu0 %v1076
    %1555 = vmatpush1.bf16.msra.mxu0 %v1075
    %1556 = vmatprep.subr.bf16.mxu0 %v1106
    %1557 = vmatpush2.bf16.msra.mxu0 %v1105
    %1558 = vmatprep.subr.bf16.mxu0 %v1104
    %1559 = vmatpush2.bf16.msra.mxu0 %v1103
    %1560 = vmatprep.subr.bf16.mxu0 %v1102
    %1561 = vmatpush2.bf16.msra.mxu0 %v1101
    %1562 = vmatprep.subr.bf16.mxu0 %v1100
    %1563 = vmatpush2.bf16.msra.mxu0 %v1099
    %1564 = vmatprep.subr.bf16.mxu0 %v1098
    %1565 = vmatpush2.bf16.msra.mxu0 %v1097
    %1566 = vmatprep.subr.bf16.mxu0 %v1096
    %1567 = vmatpush2.bf16.msra.mxu0 %v1095
    %1568 = vmatprep.subr.bf16.mxu0 %v1094
    %1569 = vmatpush2.bf16.msra.mxu0 %v1093
    %1570 = vmatprep.subr.bf16.mxu0 %v1092
    %1571 = vmatpush2.bf16.msra.mxu0 %v1091
    %1572 = vmatprep.mubr.bf16.mxu0 %v85
    %1573 = vmatmul.mubr.bf16.gmra.mxu0 %v84
    %v1574 = vpop.f32.mrf.mxu0
    %v1575 = vadd.f32 %v1534, %v1574
    %v1576 = vpop.f32.mrf.mxu0
    %v1577 = vadd.f32 %v1536, %v1576
    %v1578 = vpop.f32.mrf.mxu0
    %v1579 = vpop.f32.mrf.mxu0
    %1580 = vdwg.mxu0
    %1581 = vmatprep.subr.bf16.mxu0 0
    %1582 = vmatpush1.bf16.msra.mxu0 0
    %1583 = vmatprep.subr.bf16.mxu0 0
    %1584 = vmatpush1.bf16.msra.mxu0 0
    %1585 = vmatprep.subr.bf16.mxu0 %v1333
    %1586 = vmatpush1.bf16.msra.mxu0 %v1330
    %1587 = vmatprep.subr.bf16.mxu0 %v1116
    %1588 = vmatpush1.bf16.msra.mxu0 %v1115
    %1589 = vmatprep.subr.bf16.mxu0 %v1114
    %1590 = vmatpush1.bf16.msra.mxu0 %v1113
    %1591 = vmatprep.subr.bf16.mxu0 %v1112
    %1592 = vmatpush1.bf16.msra.mxu0 %v1111
    %1593 = vmatprep.subr.bf16.mxu0 %v1110
    %1594 = vmatpush1.bf16.msra.mxu0 %v1109
    %1595 = vmatprep.subr.bf16.mxu0 %v1108
    %1596 = vmatpush1.bf16.msra.mxu0 %v1107
    %1597 = vmatprep.subr.bf16.mxu0 0
    %1598 = vmatpush2.bf16.msra.mxu0 0
    %1599 = vmatprep.subr.bf16.mxu0 0
    %1600 = vmatpush2.bf16.msra.mxu0 0
    %1601 = vmatprep.subr.bf16.mxu0 0
    %1602 = vmatpush2.bf16.msra.mxu0 0
    %1603 = vmatprep.subr.bf16.mxu0 0
    %1604 = vmatpush2.bf16.msra.mxu0 0
    %1605 = vmatprep.subr.bf16.mxu0 0
    %1606 = vmatpush2.bf16.msra.mxu0 0
    %1607 = vmatprep.subr.bf16.mxu0 0
    %1608 = vmatpush2.bf16.msra.mxu0 0
    %1609 = vmatprep.subr.bf16.mxu0 0
    %1610 = vmatpush2.bf16.msra.mxu0 0
    %1611 = vmatprep.subr.bf16.mxu0 0
    %1612 = vmatpush2.bf16.msra.mxu0 0
    %1613 = vmatprep.mubr.bf16.mxu0 0
    %1614 = vmatmul.mubr.bf16.gmra.mxu0 %v1323
    %v1615 = vpop.f32.mrf.mxu0
    %v1616 = vadd.f32 %v1575, %v1615
    %v1617 = vpop.f32.mrf.mxu0
    %v1618 = vadd.f32 %v1577, %v1617
    %v1619 = vpop.f32.mrf.mxu0
    %v1620 = vpop.f32.mrf.mxu0
    %1621 = vdwg.mxu0
    %v1622 = vmax.f32 %v1616, 0.0
    %v1623 = vmax.f32 %v1618, 0.0
    %v1624 = vpack.c.bf16 %v1622, %v1622
    %v1625 = vpack.c.bf16 %v1623, %v1623
    %v1626 = vld [vmem:[#allocation7] sm:$0xf]
    %v1627 = vld [vmem:[#allocation7 + $0x4] sm:$0xf]
    %v1628 = vld [vmem:[#allocation7 + $0x8] sm:$0xf]
    %v1629 = vld [vmem:[#allocation7 + $0xc] sm:$0xf]
    %v1630 = vld [vmem:[#allocation7 + $0x10] sm:$0xf]
    %v1631 = vld [vmem:[#allocation7 + $0x14] sm:$0xf]
    %v1632 = vld [vmem:[#allocation7 + $0x18] sm:$0xf]
    %v1633 = vld [vmem:[#allocation7 + $0x1c] sm:$0xf]
    %v1634 = vld [vmem:[#allocation7 + $0x20] sm:$0xf]
    %v1635 = vld [vmem:[#allocation7 + $0x24] sm:$0xf]
    %v1636 = vld [vmem:[#allocation7 + $0x28] sm:$0xf]
    %v1637 = vld [vmem:[#allocation7 + $0x2c] sm:$0xf]
    %v1638 = vld [vmem:[#allocation7 + $0x30] sm:$0xf]
    %v1639 = vld [vmem:[#allocation7 + $0x34] sm:$0xf]
    %v1640 = vld [vmem:[#allocation7 + $0x38] sm:$0xf]
    %v1641 = vld [vmem:[#allocation7 + $0x3c] sm:$0xf]
    %v1642 = vld [vmem:[#allocation7 + $0x40] sm:$0xf]
    %v1643 = vld [vmem:[#allocation7 + $0x44] sm:$0xf]
    %v1644 = vld [vmem:[#allocation7 + $0x48] sm:$0xf]
    %v1645 = vld [vmem:[#allocation7 + $0x4c] sm:$0xf]
    %v1646 = vld [vmem:[#allocation7 + $0x50] sm:$0xf]
    %v1647 = vld [vmem:[#allocation7 + $0x54] sm:$0xf]
    %v1648 = vld [vmem:[#allocation7 + $0x58] sm:$0xf]
    %v1649 = vld [vmem:[#allocation7 + $0x5c] sm:$0xf]
    %v1650 = vld [vmem:[#allocation7 + $0x60] sm:$0xf]
    %v1651 = vld [vmem:[#allocation7 + $0x64] sm:$0xf]
    %v1652 = vld [vmem:[#allocation7 + $0x68] sm:$0xf]
    %v1653 = vld [vmem:[#allocation7 + $0x6c] sm:$0xf]
    %v1654 = vld [vmem:[#allocation7 + $0x70] sm:$0xf]
    %v1655 = vld [vmem:[#allocation7 + $0x74] sm:$0xf]
    %v1656 = vld [vmem:[#allocation7 + $0x78] sm:$0xf]
    %v1657 = vld [vmem:[#allocation7 + $0x7c] sm:$0xf]
    %v1658 = vld [vmem:[%s4] sm:$0x1]
    %v1660 = vlaneseq
    %v1661 = vshrl.u32 %v1660, 7
    %v1662 = vsub.s32 0, %v1661
    %v1663 = vrot.slane %v1658, %v1662
    %v1697 = vunpack.c.l.b16 %v1626
    %v1698 = vunpack.c.l.b16 %v1627
    %v1699 = vunpack.c.l.b16 %v1628
    %v1700 = vunpack.c.l.b16 %v1629
    %v1701 = vunpack.c.l.b16 %v1630
    %v1702 = vunpack.c.l.b16 %v1631
    %v1703 = vunpack.c.l.b16 %v1632
    %v1704 = vunpack.c.l.b16 %v1633
    %v1705 = vunpack.c.l.b16 %v1634
    %v1706 = vunpack.c.l.b16 %v1635
    %v1707 = vunpack.c.l.b16 %v1636
    %v1708 = vunpack.c.l.b16 %v1637
    %v1709 = vunpack.c.l.b16 %v1638
    %v1710 = vunpack.c.l.b16 %v1639
    %v1711 = vunpack.c.l.b16 %v1640
    %v1712 = vunpack.c.l.b16 %v1641
    %v1713 = vunpack.c.l.b16 %v1642
    %v1714 = vunpack.c.l.b16 %v1643
    %v1715 = vunpack.c.l.b16 %v1644
    %v1716 = vunpack.c.l.b16 %v1645
    %v1717 = vunpack.c.l.b16 %v1646
    %v1718 = vunpack.c.l.b16 %v1647
    %v1719 = vunpack.c.l.b16 %v1648
    %v1720 = vunpack.c.l.b16 %v1649
    %v1721 = vunpack.c.l.b16 %v1650
    %v1722 = vunpack.c.l.b16 %v1651
    %v1723 = vunpack.c.l.b16 %v1652
    %v1724 = vunpack.c.l.b16 %v1653
    %v1725 = vunpack.c.l.b16 %v1654
    %v1726 = vunpack.c.l.b16 %v1655
    %v1727 = vunpack.c.l.b16 %v1656
    %v1728 = vunpack.c.l.b16 %v1657
    %v1729 = vpack.c.b16 %v1698, %v1697
    %v1730 = vpack.c.b16 %v1700, %v1699
    %v1731 = vpack.c.b16 %v1702, %v1701
    %v1732 = vpack.c.b16 %v1704, %v1703
    %v1733 = vpack.c.b16 %v1706, %v1705
    %v1734 = vpack.c.b16 %v1708, %v1707
    %v1735 = vpack.c.b16 %v1710, %v1709
    %v1736 = vpack.c.b16 %v1712, %v1711
    %v1737 = vpack.c.b16 %v1714, %v1713
    %v1738 = vpack.c.b16 %v1716, %v1715
    %v1739 = vpack.c.b16 %v1718, %v1717
    %v1740 = vpack.c.b16 %v1720, %v1719
    %v1741 = vpack.c.b16 %v1722, %v1721
    %v1742 = vpack.c.b16 %v1724, %v1723
    %v1743 = vpack.c.b16 %v1726, %v1725
    %v1744 = vpack.c.b16 %v1728, %v1727
    %1761 = vmatprep.subr.bf16.mxu0 0
    %1762 = vmatpush1.bf16.msra.mxu0 %v1736
    %1763 = vmatprep.subr.bf16.mxu0 0
    %1764 = vmatpush1.bf16.msra.mxu0 %v1735
    %1765 = vmatprep.subr.bf16.mxu0 0
    %1766 = vmatpush1.bf16.msra.mxu0 %v1734
    %1767 = vmatprep.subr.bf16.mxu0 0
    %1768 = vmatpush1.bf16.msra.mxu0 %v1733
    %1769 = vmatprep.subr.bf16.mxu0 0
    %1770 = vmatpush1.bf16.msra.mxu0 %v1732
    %1771 = vmatprep.subr.bf16.mxu0 0
    %1772 = vmatpush1.bf16.msra.mxu0 %v1731
    %1773 = vmatprep.subr.bf16.mxu0 0
    %1774 = vmatpush1.bf16.msra.mxu0 %v1730
    %1775 = vmatprep.subr.bf16.mxu0 0
    %1776 = vmatpush1.bf16.msra.mxu0 %v1729
    %1777 = vmatprep.subr.bf16.mxu0 0
    %1778 = vmatpush2.bf16.msra.mxu0 %v1744
    %1779 = vmatprep.subr.bf16.mxu0 0
    %1780 = vmatpush2.bf16.msra.mxu0 %v1743
    %1781 = vmatprep.subr.bf16.mxu0 0
    %1782 = vmatpush2.bf16.msra.mxu0 %v1742
    %1783 = vmatprep.subr.bf16.mxu0 0
    %1784 = vmatpush2.bf16.msra.mxu0 %v1741
    %1785 = vmatprep.subr.bf16.mxu0 0
    %1786 = vmatpush2.bf16.msra.mxu0 %v1740
    %1787 = vmatprep.subr.bf16.mxu0 0
    %1788 = vmatpush2.bf16.msra.mxu0 %v1739
    %1789 = vmatprep.subr.bf16.mxu0 0
    %1790 = vmatpush2.bf16.msra.mxu0 %v1738
    %1791 = vmatprep.subr.bf16.mxu0 0
    %1792 = vmatpush2.bf16.msra.mxu0 %v1737
    %1793 = vmatprep.mubr.bf16.mxu0 %v1625
    %1794 = vmatmul.mubr.bf16.gmra.mxu0 %v1624
    %v1795 = vpop.f32.mrf.mxu0
    %v1796 = vadd.f32 %v1663, %v1795
    %v1797 = vpop.f32.mrf.mxu0
    %v1798 = vpop.f32.mrf.mxu0
    %v1799 = vpop.f32.mrf.mxu0
    %1800 = vdwg.mxu0
    %v1801 = vmax.f32 %v1796, 0.0
    %1802 = vst [vmem:[#allocation8] sm:$0xff] %v1801
    // Predicated region
    $region34: #{tpu_custom_call.1} parent=1 // pred_check
      _
    $region35: #{tpu_custom_call.1} parent=1 // pred_check_branch
      %1804 = sbr.rel (0) target = $region37
    $region36: #{tpu_custom_call.1} parent=1 // pred_region
      %s1806 = ssub.s32 128, 128
      %1807 = vsyncadd [#allocation4], %s1806
      %s1809 = sshll.u32 [#allocation8], 4
      %s1810 = int_to_ptr.vmem [resolvable:$true] %s1809
      %1812 = dma.vmem_to_hbm [thread:$0]  %s1810, 128, %s5, [#allocation4]
    $region37: #{tpu_custom_call.1} parent=1 // pred_fallthru
      _
    // Predicated region
    $region38: #{tpu_custom_call.1} parent=1 // pred_check
      _
    $region39: #{tpu_custom_call.1} parent=1 // pred_check_branch
      %1814 = sbr.rel (0) target = $region41
    $region40: #{tpu_custom_call.1} parent=1 // pred_region
      %1815 = dma.done [#allocation4], 128
    $region41: #{tpu_custom_call.1} parent=1 // pred_fallthru
      _
    %1816 = vsyncpa [#allocation3], 1
    %1817 = vsyncpa [#allocation6], 1
    %1818 = vsyncpa [#allocation4], 1

</llo_original>
